<compile_context>
chip_gen: v5e
topology: v5e:2x2
jax: 0.10.0
libtpu: 0.0.40
codegen_flags: <defaults>
</compile_context>

<pallas_src>
import functools

import jax
import jax.numpy as jnp
from jax.experimental import pallas as pl
from jax.experimental.pallas import tpu as pltpu


def _separate_head_kernel(*refs, H, W, cin, stack_slots, rem_relus):
    """Fused forward for all heads, one image per grid step.

    refs layout (in order):
      x_ref                       (1, Cin, H*W)
      [ws_ref, bs_ref]            stacked first hidden layers (if any head has them)
      per head, per remaining layer: w_ref (Cout, 9*Cin), b_ref (Cout, 1)
      per head: out_ref           (1, Cout_head, H*W)
    """
    HW = H * W
    n_heads = len(rem_relus)
    use_stack = any(s is not None for s in stack_slots)

    it = iter(refs)
    x_ref = next(it)
    if use_stack:
        ws_ref = next(it)
        bs_ref = next(it)
    layer_refs = []
    for relus in rem_relus:
        layer_refs.append([(next(it), next(it)) for _ in relus])
    out_refs = [next(it) for _ in range(n_heads)]

    # Lane-position masks for the 3x3 halo (conv padding = 1).
    lane = jax.lax.broadcasted_iota(jnp.int32, (1, HW), 1)
    xcol = lane % W
    not_last_col = xcol < (W - 1)   # tap dx = +1 is valid here
    not_first_col = xcol > 0        # tap dx = -1 is valid here

    def shift_cols(xf, k):
        # out[:, p] = xf[:, p + k] if 0 <= p + k < HW else 0   (k is static)
        if k == 0:
            return xf
        pad = jnp.zeros((xf.shape[0], abs(k)), xf.dtype)
        if k > 0:
            return jnp.concatenate([xf[:, k:], pad], axis=1)
        return jnp.concatenate([pad, xf[:, :HW + k]], axis=1)

    def im2col(xf):
        # (Cin, HW) -> (9*Cin, HW) with zero halo; row order = tap-major,
        # channel-minor (matches the (Cout, 9*Cin) weight layout below).
        cols = []
        for di in range(3):
            for dj in range(3):
                dy, dx = di - 1, dj - 1
                col = shift_cols(xf, dy * W + dx)
                if dx == 1:
                    col = jnp.where(not_last_col, col, 0.0)
                elif dx == -1:
                    col = jnp.where(not_first_col, col, 0.0)
                cols.append(col)
        return jnp.concatenate(cols, axis=0)

    x0 = x_ref[0]                 # (Cin, HW), channel-major, lane-dense
    x0_cols = im2col(x0)          # shared by every head's first layer

    if use_stack:
        hid = jnp.dot(ws_ref[...], x0_cols, preferred_element_type=jnp.float32)
        hid = jnp.maximum(hid + bs_ref[...], 0.0)   # fused BN+ReLU hidden layers

    for h in range(n_heads):
        slot = stack_slots[h]
        if slot is None:
            feat = x0
            cols = x0_cols
        else:
            feat = hid[slot * cin:(slot + 1) * cin, :]
            cols = im2col(feat)
        for li, ((w_ref, b_ref), relu) in enumerate(
                zip(layer_refs[h], rem_relus[h])):
            if li > 0:
                cols = im2col(feat)
            acc = jnp.dot(w_ref[...], cols, preferred_element_type=jnp.float32)
            acc = acc + b_ref[...]
            if relu:
                acc = jnp.maximum(acc, 0.0)
            feat = acc
        out_refs[h][0] = feat.astype(out_refs[h].dtype)


def _to_matmul_layout(w_hwio):
    """(3,3,Cin,Cout) HWIO conv weight -> (Cout, 9*Cin), tap-major/channel-minor."""
    cout = w_hwio.shape[-1]
    return jnp.transpose(w_hwio, (3, 0, 1, 2)).reshape(cout, -1)


def separate_head_forward(x_nchw, params, sep_head_dict):
    """Forward pass. Input/outputs use PyTorch NCHW convention."""
    N, Cin, H, W = x_nchw.shape
    HW = H * W
    x_flat = x_nchw.reshape(N, Cin, HW)          # free reshape, no transpose
    head_names = list(sep_head_dict)

    # Heads with hidden layers share input x: stack their first hidden conv
    # weights along Cout so they run as one wider matmul.
    stacked = [i for i, nm in enumerate(head_names) if len(params[nm]) >= 2]
    stack_slot = {i: s for s, i in enumerate(stacked)}

    operands = [x_flat]
    in_specs = [pl.BlockSpec((1, Cin, HW), lambda n: (n, 0, 0))]

    if stacked:
        w_stack = jnp.concatenate(
            [_to_matmul_layout(params[head_names[i]][0]['w']) for i in stacked],
            axis=0)
        b_stack = jnp.concatenate(
            [params[head_names[i]][0]['b'] for i in stacked], axis=0
        ).reshape(-1, 1)
        operands += [w_stack, b_stack]
        in_specs += [pl.BlockSpec(w_stack.shape, lambda n: (0, 0)),
                     pl.BlockSpec(b_stack.shape, lambda n: (0, 0))]

    rem_relus, stack_slots, head_couts = [], [], []
    flops = 0
    bytes_accessed = x_flat.size * 4
    for i, nm in enumerate(head_names):
        layers = params[nm]
        if i in stack_slot:
            rem = layers[1:]
            stack_slots.append(stack_slot[i])
        else:
            rem = layers
            stack_slots.append(None)
        rem_relus.append(tuple(bool(l['relu']) for l in rem))
        for l in rem:
            w_mat = _to_matmul_layout(l['w'])
            b_col = l['b'].reshape(-1, 1)
            operands += [w_mat, b_col]
            in_specs += [pl.BlockSpec(w_mat.shape, lambda n: (0, 0)),
                         pl.BlockSpec(b_col.shape, lambda n: (0, 0))]
        for l in layers:
            cout_l = l['w'].shape[-1]
            flops += 2 * N * HW * 9 * Cin * cout_l
            bytes_accessed += (l['w'].size + l['b'].size) * 4
        cout = layers[-1]['w'].shape[-1]
        head_couts.append(cout)
        bytes_accessed += N * cout * HW * 4

    out_shapes = tuple(
        jax.ShapeDtypeStruct((N, c, HW), x_nchw.dtype) for c in head_couts)
    out_specs = tuple(
        pl.BlockSpec((1, c, HW), lambda n: (n, 0, 0)) for c in head_couts)

    kernel = functools.partial(
        _separate_head_kernel, H=H, W=W, cin=Cin,
        stack_slots=tuple(stack_slots), rem_relus=tuple(rem_relus))

    outs = pl.pallas_call(
        kernel,
        out_shape=out_shapes,
        grid=(N,),
        in_specs=in_specs,
        out_specs=out_specs,
        compiler_params=pltpu.CompilerParams(
            dimension_semantics=("parallel",)),
        cost_estimate=pl.CostEstimate(
            flops=flops, transcendentals=0, bytes_accessed=bytes_accessed),
    )(*operands)

    return {nm: o.reshape(N, c, H, W)
            for nm, c, o in zip(head_names, head_couts, outs)}


def init_separate_head_params(key, input_channels, sep_head_dict,
                              init_bias=-2.19):
    """Synthetic params mirroring the module's shapes (HWIO conv weights).

    Hidden layers: conv (no bias) + BN (eval mode) folded into (w, b) + ReLU.
    Final layer: conv with bias ('hm' heads get init_bias, else 0).
    """
    eps = 1e-5
    params = {}
    for name in sep_head_dict:
        cfg = sep_head_dict[name]
        cout = cfg['out_channels']
        num_conv = cfg['num_conv']
        fan_in = 9 * input_channels
        layers = []
        for _ in range(num_conv - 1):
            key, kw, kg, kb, km = jax.random.split(key, 5)
            w = jax.random.normal(
                kw, (3, 3, input_channels, input_channels),
                jnp.float32) * (2.0 / fan_in) ** 0.5
            gamma = 1.0 + 0.1 * jax.random.normal(kg, (input_channels,),
                                                  jnp.float32)
            beta = 0.1 * jax.random.normal(kb, (input_channels,), jnp.float32)
            r_mean = 0.1 * jax.random.normal(km, (input_channels,),
                                             jnp.float32)
            r_var = jnp.ones((input_channels,), jnp.float32)
            scale = gamma / jnp.sqrt(r_var + eps)
            layers.append({'w': w * scale[None, None, None, :],   # fold BN scale
                           'b': beta - r_mean * scale,            # fold BN shift
                           'relu': True})
        key, kw = jax.random.split(key)
        w_last = jax.random.normal(
            kw, (3, 3, input_channels, cout),
            jnp.float32) * (2.0 / fan_in) ** 0.5
        if 'hm' in name:   # matches the module's substring test
            b_last = jnp.full((cout,), init_bias, jnp.float32)
        else:
            b_last = jnp.zeros((cout,), jnp.float32)
        layers.append({'w': w_last, 'b': b_last, 'relu': False})
        params[name] = layers
    return params


def _reference_forward(x_nchw, params, sep_head_dict):
    """Plain-XLA reference (lax.conv) for correctness checking."""
    ret = {}
    for name in sep_head_dict:
        h = x_nchw
        for layer in params[name]:
            w_oihw = jnp.transpose(layer['w'], (3, 2, 0, 1))
            h = jax.lax.conv_general_dilated(
                h, w_oihw, window_strides=(1, 1), padding=((1, 1), (1, 1)),
                dimension_numbers=('NCHW', 'OIHW', 'NCHW'))
            h = h + layer['b'][None, :, None, None]
            if layer['relu']:
                h = jnp.maximum(h, 0.0)
        ret[name] = h
    return ret


if __name__ == "__main__":
    key = jax.random.PRNGKey(0)

    B, C, H, W = 2, 8, 16, 16
    sep_head_dict = {
        'hm':     {'out_channels': 2, 'num_conv': 2},
        'center': {'out_channels': 2, 'num_conv': 2},
        'dim':    {'out_channels': 3, 'num_conv': 2},
    }

    key, xkey = jax.random.split(key)
    x = jax.random.normal(xkey, (B, C, H, W), jnp.float32)

    params = init_separate_head_params(key, C, sep_head_dict)
    out = separate_head_forward(x, params, sep_head_dict)
    ref = _reference_forward(x, params, sep_head_dict)

    for name, cfg in sep_head_dict.items():
        y = jax.block_until_ready(out[name])
        assert y.shape == (B, cfg['out_channels'], H, W), (name, y.shape)
        assert y.dtype == jnp.float32
        assert jnp.allclose(y, ref[name], rtol=5e-2, atol=5e-2), name

    print("KERNEL_OK")
</pallas_src>

<mosaic_0001>
module attributes {stable_mosaic.version = 11 : i64} {
  func.func @_separate_head_kernel(%arg0: i32, %arg1: memref<1x8x256xf32, #tpu.memory_space<vmem>>, %arg2: memref<24x72xf32, #tpu.memory_space<vmem>>, %arg3: memref<24x1xf32, #tpu.memory_space<vmem>>, %arg4: memref<2x72xf32, #tpu.memory_space<vmem>>, %arg5: memref<2x1xf32, #tpu.memory_space<vmem>>, %arg6: memref<2x72xf32, #tpu.memory_space<vmem>>, %arg7: memref<2x1xf32, #tpu.memory_space<vmem>>, %arg8: memref<3x72xf32, #tpu.memory_space<vmem>>, %arg9: memref<3x1xf32, #tpu.memory_space<vmem>>, %arg10: memref<1x2x256xf32, #tpu.memory_space<vmem>>, %arg11: memref<1x2x256xf32, #tpu.memory_space<vmem>>, %arg12: memref<1x3x256xf32, #tpu.memory_space<vmem>>) attributes {dimension_semantics = [#tpu.dimension_semantics<parallel>], iteration_bounds = array<i64: 2>, scalar_prefetch = 0 : i64, scratch_operands = 0 : i64, tpu.core_type = #tpu.core_type<tc>, window_params = [{transform_indices = @transform_0, window_bounds = array<i64: 1, 8, 256>}, {pipeline_mode = #tpu.pipeline_mode<synchronous>, transform_indices = @transform_1, window_bounds = array<i64: 24, 72>}, {pipeline_mode = #tpu.pipeline_mode<synchronous>, transform_indices = @transform_2, window_bounds = array<i64: 24, 1>}, {pipeline_mode = #tpu.pipeline_mode<synchronous>, transform_indices = @transform_3, window_bounds = array<i64: 2, 72>}, {pipeline_mode = #tpu.pipeline_mode<synchronous>, transform_indices = @transform_4, window_bounds = array<i64: 2, 1>}, {pipeline_mode = #tpu.pipeline_mode<synchronous>, transform_indices = @transform_5, window_bounds = array<i64: 2, 72>}, {pipeline_mode = #tpu.pipeline_mode<synchronous>, transform_indices = @transform_6, window_bounds = array<i64: 2, 1>}, {pipeline_mode = #tpu.pipeline_mode<synchronous>, transform_indices = @transform_7, window_bounds = array<i64: 3, 72>}, {pipeline_mode = #tpu.pipeline_mode<synchronous>, transform_indices = @transform_8, window_bounds = array<i64: 3, 1>}, {transform_indices = @transform_9, window_bounds = array<i64: 1, 2, 256>}, {transform_indices = @transform_10, window_bounds = array<i64: 1, 2, 256>}, {transform_indices = @transform_11, window_bounds = array<i64: 1, 3, 256>}]} {
    %0 = tpu.iota {dimensions = array<i32: 1>} : vector<1x256xi32>
    %c16_i32 = arith.constant 16 : i32
    %c0_i32 = arith.constant 0 : i32
    %1 = arith.cmpi eq, %c16_i32, %c0_i32 : i32
    %c1_i32 = arith.constant 1 : i32
    %2 = arith.select %1, %c1_i32, %c16_i32 : i32
    %3 = vector.broadcast %2 : i32 to vector<1x256xi32>
    %4 = arith.remsi %0, %3 : vector<1x256xi32>
    %c0_i32_0 = arith.constant 0 : i32
    %5 = vector.broadcast %c0_i32_0 : i32 to vector<1x256xi32>
    %6 = arith.cmpi ne, %4, %5 : vector<1x256xi32>
    %c0_i32_1 = arith.constant 0 : i32
    %7 = vector.broadcast %c0_i32_1 : i32 to vector<1x256xi32>
    %8 = arith.cmpi slt, %4, %7 : vector<1x256xi32>
    %c0_i32_2 = arith.constant 0 : i32
    %9 = arith.cmpi slt, %2, %c0_i32_2 : i32
    %10 = vector.broadcast %9 : i1 to vector<1x256xi1>
    %11 = vector.broadcast %10 : vector<1x256xi1> to vector<1x256xi1>
    %12 = arith.xori %8, %11 : vector<1x256xi1>
    %13 = arith.andi %12, %6 : vector<1x256xi1>
    %14 = vector.broadcast %2 : i32 to vector<1x256xi32>
    %15 = arith.addi %4, %14 : vector<1x256xi32>
    %16 = arith.select %13, %15, %4 : vector<1x256xi1>, vector<1x256xi32>
    %c15_i32 = arith.constant 15 : i32
    %17 = vector.broadcast %c15_i32 : i32 to vector<1x256xi32>
    %18 = arith.cmpi slt, %16, %17 : vector<1x256xi32>
    %c0_i32_3 = arith.constant 0 : i32
    %19 = vector.broadcast %c0_i32_3 : i32 to vector<1x256xi32>
    %20 = arith.cmpi sgt, %16, %19 : vector<1x256xi32>
    %c0 = arith.constant 0 : index
    %c0_4 = arith.constant 0 : index
    %c0_5 = arith.constant 0 : index
    %21 = vector.load %arg1[%c0, %c0_4, %c0_5] : memref<1x8x256xf32, #tpu.memory_space<vmem>>, vector<1x8x256xf32>
    %22 = vector.shape_cast %21 : vector<1x8x256xf32> to vector<8x256xf32>
    %cst = arith.constant 0.000000e+00 : f32
    %23 = vector.broadcast %cst : f32 to vector<8x17xf32>
    %24 = vector.extract_strided_slice %22 {offsets = [0, 0], sizes = [8, 239], strides = [1, 1]} : vector<8x256xf32> to vector<8x239xf32>
    %25 = tpu.concatenate %23, %24 in 1 : vector<8x17xf32>, vector<8x239xf32> -> vector<8x256xf32>
    %cst_6 = arith.constant 0.000000e+00 : f32
    %26 = vector.shape_cast %20 : vector<1x256xi1> to vector<1x256xi1>
    %27 = vector.broadcast %26 : vector<1x256xi1> to vector<8x256xi1>
    %28 = vector.broadcast %cst_6 : f32 to vector<8x256xf32>
    %29 = arith.select %27, %25, %28 : vector<8x256xi1>, vector<8x256xf32>
    %cst_7 = arith.constant 0.000000e+00 : f32
    %30 = vector.broadcast %cst_7 : f32 to vector<8x16xf32>
    %31 = vector.extract_strided_slice %22 {offsets = [0, 0], sizes = [8, 240], strides = [1, 1]} : vector<8x256xf32> to vector<8x240xf32>
    %32 = tpu.concatenate %30, %31 in 1 : vector<8x16xf32>, vector<8x240xf32> -> vector<8x256xf32>
    %cst_8 = arith.constant 0.000000e+00 : f32
    %33 = vector.broadcast %cst_8 : f32 to vector<8x15xf32>
    %34 = vector.extract_strided_slice %22 {offsets = [0, 0], sizes = [8, 241], strides = [1, 1]} : vector<8x256xf32> to vector<8x241xf32>
    %35 = tpu.concatenate %33, %34 in 1 : vector<8x15xf32>, vector<8x241xf32> -> vector<8x256xf32>
    %cst_9 = arith.constant 0.000000e+00 : f32
    %36 = vector.shape_cast %18 : vector<1x256xi1> to vector<1x256xi1>
    %37 = vector.broadcast %36 : vector<1x256xi1> to vector<8x256xi1>
    %38 = vector.broadcast %cst_9 : f32 to vector<8x256xf32>
    %39 = arith.select %37, %35, %38 : vector<8x256xi1>, vector<8x256xf32>
    %cst_10 = arith.constant 0.000000e+00 : f32
    %40 = vector.broadcast %cst_10 : f32 to vector<8x1xf32>
    %41 = vector.extract_strided_slice %22 {offsets = [0, 0], sizes = [8, 255], strides = [1, 1]} : vector<8x256xf32> to vector<8x255xf32>
    %42 = tpu.concatenate %40, %41 in 1 : vector<8x1xf32>, vector<8x255xf32> -> vector<8x256xf32>
    %cst_11 = arith.constant 0.000000e+00 : f32
    %43 = vector.shape_cast %20 : vector<1x256xi1> to vector<1x256xi1>
    %44 = vector.broadcast %43 : vector<1x256xi1> to vector<8x256xi1>
    %45 = vector.broadcast %cst_11 : f32 to vector<8x256xf32>
    %46 = arith.select %44, %42, %45 : vector<8x256xi1>, vector<8x256xf32>
    %cst_12 = arith.constant 0.000000e+00 : f32
    %47 = vector.broadcast %cst_12 : f32 to vector<8x1xf32>
    %48 = vector.extract_strided_slice %22 {offsets = [0, 1], sizes = [8, 255], strides = [1, 1]} : vector<8x256xf32> to vector<8x255xf32>
    %49 = tpu.concatenate %48, %47 in 1 : vector<8x255xf32>, vector<8x1xf32> -> vector<8x256xf32>
    %cst_13 = arith.constant 0.000000e+00 : f32
    %50 = vector.shape_cast %18 : vector<1x256xi1> to vector<1x256xi1>
    %51 = vector.broadcast %50 : vector<1x256xi1> to vector<8x256xi1>
    %52 = vector.broadcast %cst_13 : f32 to vector<8x256xf32>
    %53 = arith.select %51, %49, %52 : vector<8x256xi1>, vector<8x256xf32>
    %cst_14 = arith.constant 0.000000e+00 : f32
    %54 = vector.broadcast %cst_14 : f32 to vector<8x15xf32>
    %55 = vector.extract_strided_slice %22 {offsets = [0, 15], sizes = [8, 241], strides = [1, 1]} : vector<8x256xf32> to vector<8x241xf32>
    %56 = tpu.concatenate %55, %54 in 1 : vector<8x241xf32>, vector<8x15xf32> -> vector<8x256xf32>
    %cst_15 = arith.constant 0.000000e+00 : f32
    %57 = vector.shape_cast %20 : vector<1x256xi1> to vector<1x256xi1>
    %58 = vector.broadcast %57 : vector<1x256xi1> to vector<8x256xi1>
    %59 = vector.broadcast %cst_15 : f32 to vector<8x256xf32>
    %60 = arith.select %58, %56, %59 : vector<8x256xi1>, vector<8x256xf32>
    %cst_16 = arith.constant 0.000000e+00 : f32
    %61 = vector.broadcast %cst_16 : f32 to vector<8x16xf32>
    %62 = vector.extract_strided_slice %22 {offsets = [0, 16], sizes = [8, 240], strides = [1, 1]} : vector<8x256xf32> to vector<8x240xf32>
    %63 = tpu.concatenate %62, %61 in 1 : vector<8x240xf32>, vector<8x16xf32> -> vector<8x256xf32>
    %cst_17 = arith.constant 0.000000e+00 : f32
    %64 = vector.broadcast %cst_17 : f32 to vector<8x17xf32>
    %65 = vector.extract_strided_slice %22 {offsets = [0, 17], sizes = [8, 239], strides = [1, 1]} : vector<8x256xf32> to vector<8x239xf32>
    %66 = tpu.concatenate %65, %64 in 1 : vector<8x239xf32>, vector<8x17xf32> -> vector<8x256xf32>
    %cst_18 = arith.constant 0.000000e+00 : f32
    %67 = vector.shape_cast %18 : vector<1x256xi1> to vector<1x256xi1>
    %68 = vector.broadcast %67 : vector<1x256xi1> to vector<8x256xi1>
    %69 = vector.broadcast %cst_18 : f32 to vector<8x256xf32>
    %70 = arith.select %68, %66, %69 : vector<8x256xi1>, vector<8x256xf32>
    %71 = tpu.concatenate %29, %32, %39, %46, %22, %53, %60, %63, %70 in 0 : vector<8x256xf32>, vector<8x256xf32>, vector<8x256xf32>, vector<8x256xf32>, vector<8x256xf32>, vector<8x256xf32>, vector<8x256xf32>, vector<8x256xf32>, vector<8x256xf32> -> vector<72x256xf32>
    %c0_19 = arith.constant 0 : index
    %c0_20 = arith.constant 0 : index
    %72 = vector.load %arg2[%c0_19, %c0_20] : memref<24x72xf32, #tpu.memory_space<vmem>>, vector<24x72xf32>
    %cst_21 = arith.constant dense<0.000000e+00> : vector<24x256xf32>
    %73 = tpu.matmul %72, %71, %cst_21 {dimension_numbers = #tpu.dot_dimension_numbers<[1], [0], [0], [1], [0, 0, 1, 1], [], []>} : vector<24x72xf32>, vector<72x256xf32>, vector<24x256xf32> -> vector<24x256xf32>
    %c0_22 = arith.constant 0 : index
    %c0_23 = arith.constant 0 : index
    %74 = vector.load %arg3[%c0_22, %c0_23] : memref<24x1xf32, #tpu.memory_space<vmem>>, vector<24x1xf32>
    %75 = vector.broadcast %74 : vector<24x1xf32> to vector<24x256xf32>
    %76 = arith.addf %73, %75 : vector<24x256xf32>
    %cst_24 = arith.constant 0.000000e+00 : f32
    %77 = vector.broadcast %cst_24 : f32 to vector<24x256xf32>
    %78 = arith.maximumf %76, %77 : vector<24x256xf32>
    %79 = vector.extract_strided_slice %78 {offsets = [0, 0], sizes = [8, 256], strides = [1, 1]} : vector<24x256xf32> to vector<8x256xf32>
    %cst_25 = arith.constant 0.000000e+00 : f32
    %80 = vector.broadcast %cst_25 : f32 to vector<8x17xf32>
    %81 = vector.extract_strided_slice %79 {offsets = [0, 0], sizes = [8, 239], strides = [1, 1]} : vector<8x256xf32> to vector<8x239xf32>
    %82 = tpu.concatenate %80, %81 in 1 : vector<8x17xf32>, vector<8x239xf32> -> vector<8x256xf32>
    %cst_26 = arith.constant 0.000000e+00 : f32
    %83 = vector.shape_cast %20 : vector<1x256xi1> to vector<1x256xi1>
    %84 = vector.broadcast %83 : vector<1x256xi1> to vector<8x256xi1>
    %85 = vector.broadcast %cst_26 : f32 to vector<8x256xf32>
    %86 = arith.select %84, %82, %85 : vector<8x256xi1>, vector<8x256xf32>
    %cst_27 = arith.constant 0.000000e+00 : f32
    %87 = vector.broadcast %cst_27 : f32 to vector<8x16xf32>
    %88 = vector.extract_strided_slice %79 {offsets = [0, 0], sizes = [8, 240], strides = [1, 1]} : vector<8x256xf32> to vector<8x240xf32>
    %89 = tpu.concatenate %87, %88 in 1 : vector<8x16xf32>, vector<8x240xf32> -> vector<8x256xf32>
    %cst_28 = arith.constant 0.000000e+00 : f32
    %90 = vector.broadcast %cst_28 : f32 to vector<8x15xf32>
    %91 = vector.extract_strided_slice %79 {offsets = [0, 0], sizes = [8, 241], strides = [1, 1]} : vector<8x256xf32> to vector<8x241xf32>
    %92 = tpu.concatenate %90, %91 in 1 : vector<8x15xf32>, vector<8x241xf32> -> vector<8x256xf32>
    %cst_29 = arith.constant 0.000000e+00 : f32
    %93 = vector.shape_cast %18 : vector<1x256xi1> to vector<1x256xi1>
    %94 = vector.broadcast %93 : vector<1x256xi1> to vector<8x256xi1>
    %95 = vector.broadcast %cst_29 : f32 to vector<8x256xf32>
    %96 = arith.select %94, %92, %95 : vector<8x256xi1>, vector<8x256xf32>
    %cst_30 = arith.constant 0.000000e+00 : f32
    %97 = vector.broadcast %cst_30 : f32 to vector<8x1xf32>
    %98 = vector.extract_strided_slice %79 {offsets = [0, 0], sizes = [8, 255], strides = [1, 1]} : vector<8x256xf32> to vector<8x255xf32>
    %99 = tpu.concatenate %97, %98 in 1 : vector<8x1xf32>, vector<8x255xf32> -> vector<8x256xf32>
    %cst_31 = arith.constant 0.000000e+00 : f32
    %100 = vector.shape_cast %20 : vector<1x256xi1> to vector<1x256xi1>
    %101 = vector.broadcast %100 : vector<1x256xi1> to vector<8x256xi1>
    %102 = vector.broadcast %cst_31 : f32 to vector<8x256xf32>
    %103 = arith.select %101, %99, %102 : vector<8x256xi1>, vector<8x256xf32>
    %cst_32 = arith.constant 0.000000e+00 : f32
    %104 = vector.broadcast %cst_32 : f32 to vector<8x1xf32>
    %105 = vector.extract_strided_slice %79 {offsets = [0, 1], sizes = [8, 255], strides = [1, 1]} : vector<8x256xf32> to vector<8x255xf32>
    %106 = tpu.concatenate %105, %104 in 1 : vector<8x255xf32>, vector<8x1xf32> -> vector<8x256xf32>
    %cst_33 = arith.constant 0.000000e+00 : f32
    %107 = vector.shape_cast %18 : vector<1x256xi1> to vector<1x256xi1>
    %108 = vector.broadcast %107 : vector<1x256xi1> to vector<8x256xi1>
    %109 = vector.broadcast %cst_33 : f32 to vector<8x256xf32>
    %110 = arith.select %108, %106, %109 : vector<8x256xi1>, vector<8x256xf32>
    %cst_34 = arith.constant 0.000000e+00 : f32
    %111 = vector.broadcast %cst_34 : f32 to vector<8x15xf32>
    %112 = vector.extract_strided_slice %79 {offsets = [0, 15], sizes = [8, 241], strides = [1, 1]} : vector<8x256xf32> to vector<8x241xf32>
    %113 = tpu.concatenate %112, %111 in 1 : vector<8x241xf32>, vector<8x15xf32> -> vector<8x256xf32>
    %cst_35 = arith.constant 0.000000e+00 : f32
    %114 = vector.shape_cast %20 : vector<1x256xi1> to vector<1x256xi1>
    %115 = vector.broadcast %114 : vector<1x256xi1> to vector<8x256xi1>
    %116 = vector.broadcast %cst_35 : f32 to vector<8x256xf32>
    %117 = arith.select %115, %113, %116 : vector<8x256xi1>, vector<8x256xf32>
    %cst_36 = arith.constant 0.000000e+00 : f32
    %118 = vector.broadcast %cst_36 : f32 to vector<8x16xf32>
    %119 = vector.extract_strided_slice %79 {offsets = [0, 16], sizes = [8, 240], strides = [1, 1]} : vector<8x256xf32> to vector<8x240xf32>
    %120 = tpu.concatenate %119, %118 in 1 : vector<8x240xf32>, vector<8x16xf32> -> vector<8x256xf32>
    %cst_37 = arith.constant 0.000000e+00 : f32
    %121 = vector.broadcast %cst_37 : f32 to vector<8x17xf32>
    %122 = vector.extract_strided_slice %79 {offsets = [0, 17], sizes = [8, 239], strides = [1, 1]} : vector<8x256xf32> to vector<8x239xf32>
    %123 = tpu.concatenate %122, %121 in 1 : vector<8x239xf32>, vector<8x17xf32> -> vector<8x256xf32>
    %cst_38 = arith.constant 0.000000e+00 : f32
    %124 = vector.shape_cast %18 : vector<1x256xi1> to vector<1x256xi1>
    %125 = vector.broadcast %124 : vector<1x256xi1> to vector<8x256xi1>
    %126 = vector.broadcast %cst_38 : f32 to vector<8x256xf32>
    %127 = arith.select %125, %123, %126 : vector<8x256xi1>, vector<8x256xf32>
    %128 = tpu.concatenate %86, %89, %96, %103, %79, %110, %117, %120, %127 in 0 : vector<8x256xf32>, vector<8x256xf32>, vector<8x256xf32>, vector<8x256xf32>, vector<8x256xf32>, vector<8x256xf32>, vector<8x256xf32>, vector<8x256xf32>, vector<8x256xf32> -> vector<72x256xf32>
    %c0_39 = arith.constant 0 : index
    %c0_40 = arith.constant 0 : index
    %129 = vector.load %arg4[%c0_39, %c0_40] : memref<2x72xf32, #tpu.memory_space<vmem>>, vector<2x72xf32>
    %cst_41 = arith.constant dense<0.000000e+00> : vector<2x256xf32>
    %130 = tpu.matmul %129, %128, %cst_41 {dimension_numbers = #tpu.dot_dimension_numbers<[1], [0], [0], [1], [0, 0, 1, 1], [], []>} : vector<2x72xf32>, vector<72x256xf32>, vector<2x256xf32> -> vector<2x256xf32>
    %c0_42 = arith.constant 0 : index
    %c0_43 = arith.constant 0 : index
    %131 = vector.load %arg5[%c0_42, %c0_43] : memref<2x1xf32, #tpu.memory_space<vmem>>, vector<2x1xf32>
    %132 = vector.broadcast %131 : vector<2x1xf32> to vector<2x256xf32>
    %133 = arith.addf %130, %132 : vector<2x256xf32>
    %c0_44 = arith.constant 0 : index
    %c0_45 = arith.constant 0 : index
    %c0_46 = arith.constant 0 : index
    %134 = vector.load %arg10[%c0_44, %c0_45, %c0_46] : memref<1x2x256xf32, #tpu.memory_space<vmem>>, vector<1x2x256xf32>
    %135 = vector.shape_cast %134 : vector<1x2x256xf32> to vector<2x256xf32>
    %136 = vector.shape_cast %133 : vector<2x256xf32> to vector<1x2x256xf32>
    tpu.vector_store %arg10[%c0_44, %c0_45, %c0_46], %136 {strides = array<i32>} : memref<1x2x256xf32, #tpu.memory_space<vmem>>, vector<1x2x256xf32>,
    %137 = vector.extract_strided_slice %78 {offsets = [8, 0], sizes = [8, 256], strides = [1, 1]} : vector<24x256xf32> to vector<8x256xf32>
    %cst_47 = arith.constant 0.000000e+00 : f32
    %138 = vector.broadcast %cst_47 : f32 to vector<8x17xf32>
    %139 = vector.extract_strided_slice %137 {offsets = [0, 0], sizes = [8, 239], strides = [1, 1]} : vector<8x256xf32> to vector<8x239xf32>
    %140 = tpu.concatenate %138, %139 in 1 : vector<8x17xf32>, vector<8x239xf32> -> vector<8x256xf32>
    %cst_48 = arith.constant 0.000000e+00 : f32
    %141 = vector.shape_cast %20 : vector<1x256xi1> to vector<1x256xi1>
    %142 = vector.broadcast %141 : vector<1x256xi1> to vector<8x256xi1>
    %143 = vector.broadcast %cst_48 : f32 to vector<8x256xf32>
    %144 = arith.select %142, %140, %143 : vector<8x256xi1>, vector<8x256xf32>
    %cst_49 = arith.constant 0.000000e+00 : f32
    %145 = vector.broadcast %cst_49 : f32 to vector<8x16xf32>
    %146 = vector.extract_strided_slice %137 {offsets = [0, 0], sizes = [8, 240], strides = [1, 1]} : vector<8x256xf32> to vector<8x240xf32>
    %147 = tpu.concatenate %145, %146 in 1 : vector<8x16xf32>, vector<8x240xf32> -> vector<8x256xf32>
    %cst_50 = arith.constant 0.000000e+00 : f32
    %148 = vector.broadcast %cst_50 : f32 to vector<8x15xf32>
    %149 = vector.extract_strided_slice %137 {offsets = [0, 0], sizes = [8, 241], strides = [1, 1]} : vector<8x256xf32> to vector<8x241xf32>
    %150 = tpu.concatenate %148, %149 in 1 : vector<8x15xf32>, vector<8x241xf32> -> vector<8x256xf32>
    %cst_51 = arith.constant 0.000000e+00 : f32
    %151 = vector.shape_cast %18 : vector<1x256xi1> to vector<1x256xi1>
    %152 = vector.broadcast %151 : vector<1x256xi1> to vector<8x256xi1>
    %153 = vector.broadcast %cst_51 : f32 to vector<8x256xf32>
    %154 = arith.select %152, %150, %153 : vector<8x256xi1>, vector<8x256xf32>
    %cst_52 = arith.constant 0.000000e+00 : f32
    %155 = vector.broadcast %cst_52 : f32 to vector<8x1xf32>
    %156 = vector.extract_strided_slice %137 {offsets = [0, 0], sizes = [8, 255], strides = [1, 1]} : vector<8x256xf32> to vector<8x255xf32>
    %157 = tpu.concatenate %155, %156 in 1 : vector<8x1xf32>, vector<8x255xf32> -> vector<8x256xf32>
    %cst_53 = arith.constant 0.000000e+00 : f32
    %158 = vector.shape_cast %20 : vector<1x256xi1> to vector<1x256xi1>
    %159 = vector.broadcast %158 : vector<1x256xi1> to vector<8x256xi1>
    %160 = vector.broadcast %cst_53 : f32 to vector<8x256xf32>
    %161 = arith.select %159, %157, %160 : vector<8x256xi1>, vector<8x256xf32>
    %cst_54 = arith.constant 0.000000e+00 : f32
    %162 = vector.broadcast %cst_54 : f32 to vector<8x1xf32>
    %163 = vector.extract_strided_slice %137 {offsets = [0, 1], sizes = [8, 255], strides = [1, 1]} : vector<8x256xf32> to vector<8x255xf32>
    %164 = tpu.concatenate %163, %162 in 1 : vector<8x255xf32>, vector<8x1xf32> -> vector<8x256xf32>
    %cst_55 = arith.constant 0.000000e+00 : f32
    %165 = vector.shape_cast %18 : vector<1x256xi1> to vector<1x256xi1>
    %166 = vector.broadcast %165 : vector<1x256xi1> to vector<8x256xi1>
    %167 = vector.broadcast %cst_55 : f32 to vector<8x256xf32>
    %168 = arith.select %166, %164, %167 : vector<8x256xi1>, vector<8x256xf32>
    %cst_56 = arith.constant 0.000000e+00 : f32
    %169 = vector.broadcast %cst_56 : f32 to vector<8x15xf32>
    %170 = vector.extract_strided_slice %137 {offsets = [0, 15], sizes = [8, 241], strides = [1, 1]} : vector<8x256xf32> to vector<8x241xf32>
    %171 = tpu.concatenate %170, %169 in 1 : vector<8x241xf32>, vector<8x15xf32> -> vector<8x256xf32>
    %cst_57 = arith.constant 0.000000e+00 : f32
    %172 = vector.shape_cast %20 : vector<1x256xi1> to vector<1x256xi1>
    %173 = vector.broadcast %172 : vector<1x256xi1> to vector<8x256xi1>
    %174 = vector.broadcast %cst_57 : f32 to vector<8x256xf32>
    %175 = arith.select %173, %171, %174 : vector<8x256xi1>, vector<8x256xf32>
    %cst_58 = arith.constant 0.000000e+00 : f32
    %176 = vector.broadcast %cst_58 : f32 to vector<8x16xf32>
    %177 = vector.extract_strided_slice %137 {offsets = [0, 16], sizes = [8, 240], strides = [1, 1]} : vector<8x256xf32> to vector<8x240xf32>
    %178 = tpu.concatenate %177, %176 in 1 : vector<8x240xf32>, vector<8x16xf32> -> vector<8x256xf32>
    %cst_59 = arith.constant 0.000000e+00 : f32
    %179 = vector.broadcast %cst_59 : f32 to vector<8x17xf32>
    %180 = vector.extract_strided_slice %137 {offsets = [0, 17], sizes = [8, 239], strides = [1, 1]} : vector<8x256xf32> to vector<8x239xf32>
    %181 = tpu.concatenate %180, %179 in 1 : vector<8x239xf32>, vector<8x17xf32> -> vector<8x256xf32>
    %cst_60 = arith.constant 0.000000e+00 : f32
    %182 = vector.shape_cast %18 : vector<1x256xi1> to vector<1x256xi1>
    %183 = vector.broadcast %182 : vector<1x256xi1> to vector<8x256xi1>
    %184 = vector.broadcast %cst_60 : f32 to vector<8x256xf32>
    %185 = arith.select %183, %181, %184 : vector<8x256xi1>, vector<8x256xf32>
    %186 = tpu.concatenate %144, %147, %154, %161, %137, %168, %175, %178, %185 in 0 : vector<8x256xf32>, vector<8x256xf32>, vector<8x256xf32>, vector<8x256xf32>, vector<8x256xf32>, vector<8x256xf32>, vector<8x256xf32>, vector<8x256xf32>, vector<8x256xf32> -> vector<72x256xf32>
    %c0_61 = arith.constant 0 : index
    %c0_62 = arith.constant 0 : index
    %187 = vector.load %arg6[%c0_61, %c0_62] : memref<2x72xf32, #tpu.memory_space<vmem>>, vector<2x72xf32>
    %cst_63 = arith.constant dense<0.000000e+00> : vector<2x256xf32>
    %188 = tpu.matmul %187, %186, %cst_63 {dimension_numbers = #tpu.dot_dimension_numbers<[1], [0], [0], [1], [0, 0, 1, 1], [], []>} : vector<2x72xf32>, vector<72x256xf32>, vector<2x256xf32> -> vector<2x256xf32>
    %c0_64 = arith.constant 0 : index
    %c0_65 = arith.constant 0 : index
    %189 = vector.load %arg7[%c0_64, %c0_65] : memref<2x1xf32, #tpu.memory_space<vmem>>, vector<2x1xf32>
    %190 = vector.broadcast %189 : vector<2x1xf32> to vector<2x256xf32>
    %191 = arith.addf %188, %190 : vector<2x256xf32>
    %c0_66 = arith.constant 0 : index
    %c0_67 = arith.constant 0 : index
    %c0_68 = arith.constant 0 : index
    %192 = vector.load %arg11[%c0_66, %c0_67, %c0_68] : memref<1x2x256xf32, #tpu.memory_space<vmem>>, vector<1x2x256xf32>
    %193 = vector.shape_cast %192 : vector<1x2x256xf32> to vector<2x256xf32>
    %194 = vector.shape_cast %191 : vector<2x256xf32> to vector<1x2x256xf32>
    tpu.vector_store %arg11[%c0_66, %c0_67, %c0_68], %194 {strides = array<i32>} : memref<1x2x256xf32, #tpu.memory_space<vmem>>, vector<1x2x256xf32>,
    %195 = vector.extract_strided_slice %78 {offsets = [16, 0], sizes = [8, 256], strides = [1, 1]} : vector<24x256xf32> to vector<8x256xf32>
    %cst_69 = arith.constant 0.000000e+00 : f32
    %196 = vector.broadcast %cst_69 : f32 to vector<8x17xf32>
    %197 = vector.extract_strided_slice %195 {offsets = [0, 0], sizes = [8, 239], strides = [1, 1]} : vector<8x256xf32> to vector<8x239xf32>
    %198 = tpu.concatenate %196, %197 in 1 : vector<8x17xf32>, vector<8x239xf32> -> vector<8x256xf32>
    %cst_70 = arith.constant 0.000000e+00 : f32
    %199 = vector.shape_cast %20 : vector<1x256xi1> to vector<1x256xi1>
    %200 = vector.broadcast %199 : vector<1x256xi1> to vector<8x256xi1>
    %201 = vector.broadcast %cst_70 : f32 to vector<8x256xf32>
    %202 = arith.select %200, %198, %201 : vector<8x256xi1>, vector<8x256xf32>
    %cst_71 = arith.constant 0.000000e+00 : f32
    %203 = vector.broadcast %cst_71 : f32 to vector<8x16xf32>
    %204 = vector.extract_strided_slice %195 {offsets = [0, 0], sizes = [8, 240], strides = [1, 1]} : vector<8x256xf32> to vector<8x240xf32>
    %205 = tpu.concatenate %203, %204 in 1 : vector<8x16xf32>, vector<8x240xf32> -> vector<8x256xf32>
    %cst_72 = arith.constant 0.000000e+00 : f32
    %206 = vector.broadcast %cst_72 : f32 to vector<8x15xf32>
    %207 = vector.extract_strided_slice %195 {offsets = [0, 0], sizes = [8, 241], strides = [1, 1]} : vector<8x256xf32> to vector<8x241xf32>
    %208 = tpu.concatenate %206, %207 in 1 : vector<8x15xf32>, vector<8x241xf32> -> vector<8x256xf32>
    %cst_73 = arith.constant 0.000000e+00 : f32
    %209 = vector.shape_cast %18 : vector<1x256xi1> to vector<1x256xi1>
    %210 = vector.broadcast %209 : vector<1x256xi1> to vector<8x256xi1>
    %211 = vector.broadcast %cst_73 : f32 to vector<8x256xf32>
    %212 = arith.select %210, %208, %211 : vector<8x256xi1>, vector<8x256xf32>
    %cst_74 = arith.constant 0.000000e+00 : f32
    %213 = vector.broadcast %cst_74 : f32 to vector<8x1xf32>
    %214 = vector.extract_strided_slice %195 {offsets = [0, 0], sizes = [8, 255], strides = [1, 1]} : vector<8x256xf32> to vector<8x255xf32>
    %215 = tpu.concatenate %213, %214 in 1 : vector<8x1xf32>, vector<8x255xf32> -> vector<8x256xf32>
    %cst_75 = arith.constant 0.000000e+00 : f32
    %216 = vector.shape_cast %20 : vector<1x256xi1> to vector<1x256xi1>
    %217 = vector.broadcast %216 : vector<1x256xi1> to vector<8x256xi1>
    %218 = vector.broadcast %cst_75 : f32 to vector<8x256xf32>
    %219 = arith.select %217, %215, %218 : vector<8x256xi1>, vector<8x256xf32>
    %cst_76 = arith.constant 0.000000e+00 : f32
    %220 = vector.broadcast %cst_76 : f32 to vector<8x1xf32>
    %221 = vector.extract_strided_slice %195 {offsets = [0, 1], sizes = [8, 255], strides = [1, 1]} : vector<8x256xf32> to vector<8x255xf32>
    %222 = tpu.concatenate %221, %220 in 1 : vector<8x255xf32>, vector<8x1xf32> -> vector<8x256xf32>
    %cst_77 = arith.constant 0.000000e+00 : f32
    %223 = vector.shape_cast %18 : vector<1x256xi1> to vector<1x256xi1>
    %224 = vector.broadcast %223 : vector<1x256xi1> to vector<8x256xi1>
    %225 = vector.broadcast %cst_77 : f32 to vector<8x256xf32>
    %226 = arith.select %224, %222, %225 : vector<8x256xi1>, vector<8x256xf32>
    %cst_78 = arith.constant 0.000000e+00 : f32
    %227 = vector.broadcast %cst_78 : f32 to vector<8x15xf32>
    %228 = vector.extract_strided_slice %195 {offsets = [0, 15], sizes = [8, 241], strides = [1, 1]} : vector<8x256xf32> to vector<8x241xf32>
    %229 = tpu.concatenate %228, %227 in 1 : vector<8x241xf32>, vector<8x15xf32> -> vector<8x256xf32>
    %cst_79 = arith.constant 0.000000e+00 : f32
    %230 = vector.shape_cast %20 : vector<1x256xi1> to vector<1x256xi1>
    %231 = vector.broadcast %230 : vector<1x256xi1> to vector<8x256xi1>
    %232 = vector.broadcast %cst_79 : f32 to vector<8x256xf32>
    %233 = arith.select %231, %229, %232 : vector<8x256xi1>, vector<8x256xf32>
    %cst_80 = arith.constant 0.000000e+00 : f32
    %234 = vector.broadcast %cst_80 : f32 to vector<8x16xf32>
    %235 = vector.extract_strided_slice %195 {offsets = [0, 16], sizes = [8, 240], strides = [1, 1]} : vector<8x256xf32> to vector<8x240xf32>
    %236 = tpu.concatenate %235, %234 in 1 : vector<8x240xf32>, vector<8x16xf32> -> vector<8x256xf32>
    %cst_81 = arith.constant 0.000000e+00 : f32
    %237 = vector.broadcast %cst_81 : f32 to vector<8x17xf32>
    %238 = vector.extract_strided_slice %195 {offsets = [0, 17], sizes = [8, 239], strides = [1, 1]} : vector<8x256xf32> to vector<8x239xf32>
    %239 = tpu.concatenate %238, %237 in 1 : vector<8x239xf32>, vector<8x17xf32> -> vector<8x256xf32>
    %cst_82 = arith.constant 0.000000e+00 : f32
    %240 = vector.shape_cast %18 : vector<1x256xi1> to vector<1x256xi1>
    %241 = vector.broadcast %240 : vector<1x256xi1> to vector<8x256xi1>
    %242 = vector.broadcast %cst_82 : f32 to vector<8x256xf32>
    %243 = arith.select %241, %239, %242 : vector<8x256xi1>, vector<8x256xf32>
    %244 = tpu.concatenate %202, %205, %212, %219, %195, %226, %233, %236, %243 in 0 : vector<8x256xf32>, vector<8x256xf32>, vector<8x256xf32>, vector<8x256xf32>, vector<8x256xf32>, vector<8x256xf32>, vector<8x256xf32>, vector<8x256xf32>, vector<8x256xf32> -> vector<72x256xf32>
    %c0_83 = arith.constant 0 : index
    %c0_84 = arith.constant 0 : index
    %245 = vector.load %arg8[%c0_83, %c0_84] : memref<3x72xf32, #tpu.memory_space<vmem>>, vector<3x72xf32>
    %cst_85 = arith.constant dense<0.000000e+00> : vector<3x256xf32>
    %246 = tpu.matmul %245, %244, %cst_85 {dimension_numbers = #tpu.dot_dimension_numbers<[1], [0], [0], [1], [0, 0, 1, 1], [], []>} : vector<3x72xf32>, vector<72x256xf32>, vector<3x256xf32> -> vector<3x256xf32>
    %c0_86 = arith.constant 0 : index
    %c0_87 = arith.constant 0 : index
    %247 = vector.load %arg9[%c0_86, %c0_87] : memref<3x1xf32, #tpu.memory_space<vmem>>, vector<3x1xf32>
    %248 = vector.broadcast %247 : vector<3x1xf32> to vector<3x256xf32>
    %249 = arith.addf %246, %248 : vector<3x256xf32>
    %c0_88 = arith.constant 0 : index
    %c0_89 = arith.constant 0 : index
    %c0_90 = arith.constant 0 : index
    %250 = vector.load %arg12[%c0_88, %c0_89, %c0_90] : memref<1x3x256xf32, #tpu.memory_space<vmem>>, vector<1x3x256xf32>
    %251 = vector.shape_cast %250 : vector<1x3x256xf32> to vector<3x256xf32>
    %252 = vector.shape_cast %249 : vector<3x256xf32> to vector<1x3x256xf32>
    tpu.vector_store %arg12[%c0_88, %c0_89, %c0_90], %252 {strides = array<i32>} : memref<1x3x256xf32, #tpu.memory_space<vmem>>, vector<1x3x256xf32>,
    return
  }
  func.func @transform_0(%arg0: i32) -> (i32, i32, i32) {
    %c0_i32 = arith.constant 0 : i32
    %c0_i32_0 = arith.constant 0 : i32
    %c0_i32_1 = arith.constant 0 : i32
    return %arg0, %c0_i32, %c0_i32_0 : i32, i32, i32
  }
  func.func @transform_1(%arg0: i32) -> (i32, i32) {
    %c0_i32 = arith.constant 0 : i32
    %c0_i32_0 = arith.constant 0 : i32
    %c0_i32_1 = arith.constant 0 : i32
    return %c0_i32, %c0_i32_0 : i32, i32
  }
  func.func @transform_2(%arg0: i32) -> (i32, i32) {
    %c0_i32 = arith.constant 0 : i32
    %c0_i32_0 = arith.constant 0 : i32
    %c0_i32_1 = arith.constant 0 : i32
    return %c0_i32, %c0_i32_0 : i32, i32
  }
  func.func @transform_3(%arg0: i32) -> (i32, i32) {
    %c0_i32 = arith.constant 0 : i32
    %c0_i32_0 = arith.constant 0 : i32
    %c0_i32_1 = arith.constant 0 : i32
    return %c0_i32, %c0_i32_0 : i32, i32
  }
  func.func @transform_4(%arg0: i32) -> (i32, i32) {
    %c0_i32 = arith.constant 0 : i32
    %c0_i32_0 = arith.constant 0 : i32
    %c0_i32_1 = arith.constant 0 : i32
    return %c0_i32, %c0_i32_0 : i32, i32
  }
  func.func @transform_5(%arg0: i32) -> (i32, i32) {
    %c0_i32 = arith.constant 0 : i32
    %c0_i32_0 = arith.constant 0 : i32
    %c0_i32_1 = arith.constant 0 : i32
    return %c0_i32, %c0_i32_0 : i32, i32
  }
  func.func @transform_6(%arg0: i32) -> (i32, i32) {
    %c0_i32 = arith.constant 0 : i32
    %c0_i32_0 = arith.constant 0 : i32
    %c0_i32_1 = arith.constant 0 : i32
    return %c0_i32, %c0_i32_0 : i32, i32
  }
  func.func @transform_7(%arg0: i32) -> (i32, i32) {
    %c0_i32 = arith.constant 0 : i32
    %c0_i32_0 = arith.constant 0 : i32
    %c0_i32_1 = arith.constant 0 : i32
    return %c0_i32, %c0_i32_0 : i32, i32
  }
  func.func @transform_8(%arg0: i32) -> (i32, i32) {
    %c0_i32 = arith.constant 0 : i32
    %c0_i32_0 = arith.constant 0 : i32
    %c0_i32_1 = arith.constant 0 : i32
    return %c0_i32, %c0_i32_0 : i32, i32
  }
  func.func @transform_9(%arg0: i32) -> (i32, i32, i32) {
    %c0_i32 = arith.constant 0 : i32
    %c0_i32_0 = arith.constant 0 : i32
    %c0_i32_1 = arith.constant 0 : i32
    return %arg0, %c0_i32, %c0_i32_0 : i32, i32, i32
  }
  func.func @transform_10(%arg0: i32) -> (i32, i32, i32) {
    %c0_i32 = arith.constant 0 : i32
    %c0_i32_0 = arith.constant 0 : i32
    %c0_i32_1 = arith.constant 0 : i32
    return %arg0, %c0_i32, %c0_i32_0 : i32, i32, i32
  }
  func.func @transform_11(%arg0: i32) -> (i32, i32, i32) {
    %c0_i32 = arith.constant 0 : i32
    %c0_i32_0 = arith.constant 0 : i32
    %c0_i32_1 = arith.constant 0 : i32
    return %arg0, %c0_i32, %c0_i32_0 : i32, i32, i32
  }
}

</mosaic_0001>

<llo_original>
// kernel: tpu_custom_call.1
$region0: #{tpu_custom_call.1}
  #allocation0 [shape = 'u32[]', space=smem, size = 0x4, offset = 0x4, fixed_abs, tag = 'smem constant byte address 0x4 - core index']
  #allocation1 [shape = 'u32[72,128]{1,0:T(1,128)}', space=vmem, size = 0x9000, scoped, tag = 'internal scratch']
  %s0 = inlined_call_operand.vmem [shape: f32[2,8,256], index: 0, kind: input, shape index: {}]
  %s1 = inlined_call_operand.hbm [shape: f32[24,72], index: 1, kind: input, shape index: {}]
  %s2 = inlined_call_operand.vmem [shape: f32[24,1], index: 2, kind: input, shape index: {}]
  %s3 = inlined_call_operand.vmem [shape: f32[2,72], index: 3, kind: input, shape index: {}]
  %s4 = inlined_call_operand.vmem [shape: f32[2,1], index: 4, kind: input, shape index: {}]
  %s5 = inlined_call_operand.vmem [shape: f32[2,72], index: 5, kind: input, shape index: {}]
  %s6 = inlined_call_operand.vmem [shape: f32[2,1], index: 6, kind: input, shape index: {}]
  %s7 = inlined_call_operand.vmem [shape: f32[3,72], index: 7, kind: input, shape index: {}]
  %s8 = inlined_call_operand.vmem [shape: f32[3,1], index: 8, kind: input, shape index: {}]
  %s9 = inlined_call_operand.hbm [shape: f32[2,2,256], index: 9, kind: output, shape index: {0}]
  %s10 = inlined_call_operand.hbm [shape: f32[2,2,256], index: 10, kind: output, shape index: {1}]
  %s11 = inlined_call_operand.vmem [shape: f32[2,3,256], index: 11, kind: output, shape index: {2}]
  %12 = xla_tuple %s9, %s10, %s11
  %s13 = sld [smem:[#allocation0]]
  $region89: #{tpu_custom_call.1} parent=0
    _
  %s15 = ssub.s32 1, %s13
  %s16 = scalar_select 0, %s15, %s13
  $region1: #{tpu_custom_call.1} parent=0
    #allocation2 [shape = 'u8[12288]{0}', space=vmem, size = 0x3000, scoped, tag = 'input window, operand 1, single buffered']
    #allocation3 [shape = 's32[2]{0}', space=sflag, size = 0x8, scoped, tag = 'scoped memory for tpu_custom_call.1']
    #allocation4 [shape = 's32[2]{0}', space=sflag, size = 0x8, scoped, tag = 'scoped memory for tpu_custom_call.1']
    #allocation5 [shape = 'u8[4096]{0}', space=vmem, size = 0x1000, scoped, tag = 'output window, operand 0']
    #allocation6 [shape = 'u8[4096]{0}', space=vmem, size = 0x1000, scoped, tag = 'output window, operand 1']
    #allocation7 [shape = 's32[2]{0}', space=sflag, size = 0x8, scoped, tag = 'scoped memory for tpu_custom_call.1']
    %17 = vsyncpa [#allocation3], 0
    %18 = vsyncpa [#allocation4], 0
    %s19 = scalar_lea.sflag [#allocation4], 1
    %20 = vsyncpa %s19, 0
    %21 = vsyncpa [#allocation7], 0
    %s22 = scalar_lea.sflag [#allocation7], 1
    %23 = vsyncpa %s22, 0
    loop: start=0, step=1, limit=4
    $region2: #{tpu_custom_call.1} parent=1 // loop_pre_header
      _
    $region3: #{tpu_custom_call.1} parent=1 // loop_header
      %s25 = sphi 0, %s29
      %p26 = scmp.ge.s32.totalorder %s25, 4
      %s35 = sphi 0, %s37
      %s38 = sphi 0, %s35
      %s39 = sphi 0, %s38
      %s55 = sphi 0, %s39
      %s59 = sphi 0, %s59
      %s61 = sphi 0, %s59
      %s62 = sphi 0, %s61
      %s76 = sphi 0, %s62
      %s80 = sphi 0, %s80
      %s82 = sphi 0, %s80
      %s83 = sphi 0, %s82
      %s97 = sphi 0, %s83
      %s101 = sphi 0, %s101
      %s103 = sphi 0, %s101
      %s104 = sphi 0, %s103
      %s118 = sphi 0, %s104
      %s122 = sphi 0, %s122
      %s124 = sphi 0, %s122
      %s125 = sphi 0, %s124
      %s139 = sphi 0, %s125
      %s143 = sphi 0, %s143
      %s145 = sphi 0, %s143
      %s146 = sphi 0, %s145
      %s160 = sphi 0, %s146
      %s164 = sphi 0, %s164
      %s166 = sphi 0, %s164
      %s167 = sphi 0, %s166
      %s181 = sphi 0, %s167
      %s185 = sphi 0, %s185
      %s187 = sphi 0, %s185
      %s188 = sphi 0, %s187
      %s202 = sphi 0, %s188
      %s206 = sphi 0, %s206
      %s208 = sphi 0, %s206
      %s209 = sphi 0, %s208
      %s223 = sphi 0, %s209
      %s229 = sphi 0, %s231
      %s232 = sphi 0, %s229
      %s233 = sphi 0, %s232
      %s249 = sphi 0, %s233
      %s255 = sphi 0, %s257
      %s258 = sphi 0, %s255
      %s259 = sphi 0, %s258
      %s275 = sphi 0, %s259
      %s281 = sphi 0, %s283
      %s284 = sphi 0, %s281
      %s285 = sphi 0, %s284
      %s301 = sphi 0, %s285
    $region4: #{tpu_custom_call.1} parent=1 // loop_header_branch
      %28 = sbr.rel (%p26) target = $region8
    $region5: #{tpu_custom_call.1} parent=1 // loop_body
      %s30 = ssub.s32 %s25, 1
      %s31 = ssub.s32 %s25, 2
      %s32 = sadd.s32 %s25, 1
      %s33 = ssub.s32 %s25, %s32
      %p34 = scmp.eq.s32.totalorder %s33, 0
      %s36 = sadd.s32 %s35, 1
      %s37 = scalar_select %p34, %s35, %s36
      %p40 = pneg %p34
      %p41 = scmp.eq.s32.totalorder %s25, 1
      %p42 = por %p40, %p41
      %p43 = scmp.ne.s32.totalorder %s35, %s38
      %p44 = scmp.eq.s32.totalorder %s25, 0
      %p45 = por %p43, %p44
      %p46 = scmp.ne.s32.totalorder %s35, %s38
      %p47 = scmp.eq.s32.totalorder %s30, 1
      %p48 = por %p46, %p47
      %p49 = scmp.ne.s32.totalorder %s38, %s39
      %p50 = scmp.eq.s32.totalorder %s30, 0
      %p51 = por %p49, %p50
      %p52 = scmp.ne.s32.totalorder %s38, %s39
      %p53 = scmp.eq.s32.totalorder %s31, 1
      %p54 = por %p52, %p53
      %p56 = scmp.ne.s32.totalorder %s39, %s55
      %p57 = scmp.eq.s32.totalorder %s31, 0
      %p58 = por %p56, %p57
      %s60 = sadd.s32 %s59, 1
      %p63 = scmp.eq.s32.totalorder %s25, 1
      %p64 = scmp.ne.s32.totalorder %s59, %s61
      %p65 = scmp.eq.s32.totalorder %s25, 0
      %p66 = por %p64, %p65
      %p67 = scmp.ne.s32.totalorder %s59, %s61
      %p68 = scmp.eq.s32.totalorder %s30, 1
      %p69 = por %p67, %p68
      %p70 = scmp.ne.s32.totalorder %s61, %s62
      %p71 = scmp.eq.s32.totalorder %s30, 0
      %p72 = por %p70, %p71
      %p73 = scmp.ne.s32.totalorder %s61, %s62
      %p74 = scmp.eq.s32.totalorder %s31, 1
      %p75 = por %p73, %p74
      %p77 = scmp.ne.s32.totalorder %s62, %s76
      %p78 = scmp.eq.s32.totalorder %s31, 0
      %p79 = por %p77, %p78
      %s81 = sadd.s32 %s80, 1
      %p84 = scmp.eq.s32.totalorder %s25, 1
      %p85 = scmp.ne.s32.totalorder %s80, %s82
      %p86 = scmp.eq.s32.totalorder %s25, 0
      %p87 = por %p85, %p86
      %p88 = scmp.ne.s32.totalorder %s80, %s82
      %p89 = scmp.eq.s32.totalorder %s30, 1
      %p90 = por %p88, %p89
      %p91 = scmp.ne.s32.totalorder %s82, %s83
      %p92 = scmp.eq.s32.totalorder %s30, 0
      %p93 = por %p91, %p92
      %p94 = scmp.ne.s32.totalorder %s82, %s83
      %p95 = scmp.eq.s32.totalorder %s31, 1
      %p96 = por %p94, %p95
      %p98 = scmp.ne.s32.totalorder %s83, %s97
      %p99 = scmp.eq.s32.totalorder %s31, 0
      %p100 = por %p98, %p99
      %s102 = sadd.s32 %s101, 1
      %p105 = scmp.eq.s32.totalorder %s25, 1
      %p106 = scmp.ne.s32.totalorder %s101, %s103
      %p107 = scmp.eq.s32.totalorder %s25, 0
      %p108 = por %p106, %p107
      %p109 = scmp.ne.s32.totalorder %s101, %s103
      %p110 = scmp.eq.s32.totalorder %s30, 1
      %p111 = por %p109, %p110
      %p112 = scmp.ne.s32.totalorder %s103, %s104
      %p113 = scmp.eq.s32.totalorder %s30, 0
      %p114 = por %p112, %p113
      %p115 = scmp.ne.s32.totalorder %s103, %s104
      %p116 = scmp.eq.s32.totalorder %s31, 1
      %p117 = por %p115, %p116
      %p119 = scmp.ne.s32.totalorder %s104, %s118
      %p120 = scmp.eq.s32.totalorder %s31, 0
      %p121 = por %p119, %p120
      %s123 = sadd.s32 %s122, 1
      %p126 = scmp.eq.s32.totalorder %s25, 1
      %p127 = scmp.ne.s32.totalorder %s122, %s124
      %p128 = scmp.eq.s32.totalorder %s25, 0
      %p129 = por %p127, %p128
      %p130 = scmp.ne.s32.totalorder %s122, %s124
      %p131 = scmp.eq.s32.totalorder %s30, 1
      %p132 = por %p130, %p131
      %p133 = scmp.ne.s32.totalorder %s124, %s125
      %p134 = scmp.eq.s32.totalorder %s30, 0
      %p135 = por %p133, %p134
      %p136 = scmp.ne.s32.totalorder %s124, %s125
      %p137 = scmp.eq.s32.totalorder %s31, 1
      %p138 = por %p136, %p137
      %p140 = scmp.ne.s32.totalorder %s125, %s139
      %p141 = scmp.eq.s32.totalorder %s31, 0
      %p142 = por %p140, %p141
      %s144 = sadd.s32 %s143, 1
      %p147 = scmp.eq.s32.totalorder %s25, 1
      %p148 = scmp.ne.s32.totalorder %s143, %s145
      %p149 = scmp.eq.s32.totalorder %s25, 0
      %p150 = por %p148, %p149
      %p151 = scmp.ne.s32.totalorder %s143, %s145
      %p152 = scmp.eq.s32.totalorder %s30, 1
      %p153 = por %p151, %p152
      %p154 = scmp.ne.s32.totalorder %s145, %s146
      %p155 = scmp.eq.s32.totalorder %s30, 0
      %p156 = por %p154, %p155
      %p157 = scmp.ne.s32.totalorder %s145, %s146
      %p158 = scmp.eq.s32.totalorder %s31, 1
      %p159 = por %p157, %p158
      %p161 = scmp.ne.s32.totalorder %s146, %s160
      %p162 = scmp.eq.s32.totalorder %s31, 0
      %p163 = por %p161, %p162
      %s165 = sadd.s32 %s164, 1
      %p168 = scmp.eq.s32.totalorder %s25, 1
      %p169 = scmp.ne.s32.totalorder %s164, %s166
      %p170 = scmp.eq.s32.totalorder %s25, 0
      %p171 = por %p169, %p170
      %p172 = scmp.ne.s32.totalorder %s164, %s166
      %p173 = scmp.eq.s32.totalorder %s30, 1
      %p174 = por %p172, %p173
      %p175 = scmp.ne.s32.totalorder %s166, %s167
      %p176 = scmp.eq.s32.totalorder %s30, 0
      %p177 = por %p175, %p176
      %p178 = scmp.ne.s32.totalorder %s166, %s167
      %p179 = scmp.eq.s32.totalorder %s31, 1
      %p180 = por %p178, %p179
      %p182 = scmp.ne.s32.totalorder %s167, %s181
      %p183 = scmp.eq.s32.totalorder %s31, 0
      %p184 = por %p182, %p183
      %s186 = sadd.s32 %s185, 1
      %p189 = scmp.eq.s32.totalorder %s25, 1
      %p190 = scmp.ne.s32.totalorder %s185, %s187
      %p191 = scmp.eq.s32.totalorder %s25, 0
      %p192 = por %p190, %p191
      %p193 = scmp.ne.s32.totalorder %s185, %s187
      %p194 = scmp.eq.s32.totalorder %s30, 1
      %p195 = por %p193, %p194
      %p196 = scmp.ne.s32.totalorder %s187, %s188
      %p197 = scmp.eq.s32.totalorder %s30, 0
      %p198 = por %p196, %p197
      %p199 = scmp.ne.s32.totalorder %s187, %s188
      %p200 = scmp.eq.s32.totalorder %s31, 1
      %p201 = por %p199, %p200
      %p203 = scmp.ne.s32.totalorder %s188, %s202
      %p204 = scmp.eq.s32.totalorder %s31, 0
      %p205 = por %p203, %p204
      %s207 = sadd.s32 %s206, 1
      %p210 = scmp.eq.s32.totalorder %s25, 1
      %p211 = scmp.ne.s32.totalorder %s206, %s208
      %p212 = scmp.eq.s32.totalorder %s25, 0
      %p213 = por %p211, %p212
      %p214 = scmp.ne.s32.totalorder %s206, %s208
      %p215 = scmp.eq.s32.totalorder %s30, 1
      %p216 = por %p214, %p215
      %p217 = scmp.ne.s32.totalorder %s208, %s209
      %p218 = scmp.eq.s32.totalorder %s30, 0
      %p219 = por %p217, %p218
      %p220 = scmp.ne.s32.totalorder %s208, %s209
      %p221 = scmp.eq.s32.totalorder %s31, 1
      %p222 = por %p220, %p221
      %p224 = scmp.ne.s32.totalorder %s209, %s223
      %p225 = scmp.eq.s32.totalorder %s31, 0
      %p226 = por %p224, %p225
      %s227 = ssub.s32 %s25, %s32
      %p228 = scmp.eq.s32.totalorder %s227, 0
      %s230 = sadd.s32 %s229, 1
      %s231 = scalar_select %p228, %s229, %s230
      %p234 = pneg %p228
      %p235 = scmp.eq.s32.totalorder %s25, 1
      %p236 = por %p234, %p235
      %p237 = scmp.ne.s32.totalorder %s229, %s232
      %p238 = scmp.eq.s32.totalorder %s25, 0
      %p239 = por %p237, %p238
      %p240 = scmp.ne.s32.totalorder %s229, %s232
      %p241 = scmp.eq.s32.totalorder %s30, 1
      %p242 = por %p240, %p241
      %p243 = scmp.ne.s32.totalorder %s232, %s233
      %p244 = scmp.eq.s32.totalorder %s30, 0
      %p245 = por %p243, %p244
      %p246 = scmp.ne.s32.totalorder %s232, %s233
      %p247 = scmp.eq.s32.totalorder %s31, 1
      %p248 = por %p246, %p247
      %p250 = scmp.ne.s32.totalorder %s233, %s249
      %p251 = scmp.eq.s32.totalorder %s31, 0
      %p252 = por %p250, %p251
      %s253 = ssub.s32 %s25, %s32
      %p254 = scmp.eq.s32.totalorder %s253, 0
      %s256 = sadd.s32 %s255, 1
      %s257 = scalar_select %p254, %s255, %s256
      %p260 = pneg %p254
      %p261 = scmp.eq.s32.totalorder %s25, 1
      %p262 = por %p260, %p261
      %p263 = scmp.ne.s32.totalorder %s255, %s258
      %p264 = scmp.eq.s32.totalorder %s25, 0
      %p265 = por %p263, %p264
      %p266 = scmp.ne.s32.totalorder %s255, %s258
      %p267 = scmp.eq.s32.totalorder %s30, 1
      %p268 = por %p266, %p267
      %p269 = scmp.ne.s32.totalorder %s258, %s259
      %p270 = scmp.eq.s32.totalorder %s30, 0
      %p271 = por %p269, %p270
      %p272 = scmp.ne.s32.totalorder %s258, %s259
      %p273 = scmp.eq.s32.totalorder %s31, 1
      %p274 = por %p272, %p273
      %p276 = scmp.ne.s32.totalorder %s259, %s275
      %p277 = scmp.eq.s32.totalorder %s31, 0
      %p278 = por %p276, %p277
      %s279 = ssub.s32 %s25, %s32
      %p280 = scmp.eq.s32.totalorder %s279, 0
      %s282 = sadd.s32 %s281, 1
      %s283 = scalar_select %p280, %s281, %s282
      %p286 = pneg %p280
      %p287 = scmp.eq.s32.totalorder %s25, 1
      %p288 = por %p286, %p287
      %p289 = scmp.ne.s32.totalorder %s281, %s284
      %p290 = scmp.eq.s32.totalorder %s25, 0
      %p291 = por %p289, %p290
      %p292 = scmp.ne.s32.totalorder %s281, %s284
      %p293 = scmp.eq.s32.totalorder %s30, 1
      %p294 = por %p292, %p293
      %p295 = scmp.ne.s32.totalorder %s284, %s285
      %p296 = scmp.eq.s32.totalorder %s30, 0
      %p297 = por %p295, %p296
      %p298 = scmp.ne.s32.totalorder %s284, %s285
      %p299 = scmp.eq.s32.totalorder %s31, 1
      %p300 = por %p298, %p299
      %p302 = scmp.ne.s32.totalorder %s285, %s301
      %p303 = scmp.eq.s32.totalorder %s31, 0
      %p304 = por %p302, %p303
      %p305 = scmp.le.s32.totalorder 1, %s25
      %p306 = scmp.lt.s32.totalorder %s25, 3
      %p307 = pnand %p305, %p306
      %p308 = pneg %p307
      // Predicated region
      $region9: #{tpu_custom_call.1} parent=5 // pred_check
        _
      $region10: #{tpu_custom_call.1} parent=5 // pred_check_branch
        %310 = sbr.rel (%p307) target = $region12
      $region11: #{tpu_custom_call.1} parent=5 // pred_region
        %s311 = ssub.s32 %s25, 1
        // Predicated region
        $region13: #{tpu_custom_call.1} parent=11 // pred_check
          %p312 = pneg %p72
        $region14: #{tpu_custom_call.1} parent=11 // pred_check_branch
          %314 = sbr.rel (%p312) target = $region16
        $region15: #{tpu_custom_call.1} parent=11 // pred_region
          %316 = vsyncadd [#allocation3], 0
          %s317 = sshll.u32 %s1, 4
          %s318 = int_to_ptr.hbm [resolvable:$true] %s317
          %s319 = sshll.u32 [#allocation2], 4
          %s320 = int_to_ptr.vmem [resolvable:$true] %s319
          %325 = dma.hbm_to_vmem [thread:$0]  %s318, 384, %s320, [#allocation3], 128, 128, 8
        $region16: #{tpu_custom_call.1} parent=11 // pred_fallthru
          _
        // Predicated region
        $region17: #{tpu_custom_call.1} parent=11 // pred_check
          %p326 = pneg %p93
        $region18: #{tpu_custom_call.1} parent=11 // pred_check_branch
          %328 = sbr.rel (%p326) target = $region20
        $region19: #{tpu_custom_call.1} parent=11 // pred_region
          _
        $region20: #{tpu_custom_call.1} parent=11 // pred_fallthru
          _
        // Predicated region
        $region21: #{tpu_custom_call.1} parent=11 // pred_check
          %p329 = pneg %p114
        $region22: #{tpu_custom_call.1} parent=11 // pred_check_branch
          %331 = sbr.rel (%p329) target = $region24
        $region23: #{tpu_custom_call.1} parent=11 // pred_region
          _
        $region24: #{tpu_custom_call.1} parent=11 // pred_fallthru
          _
        // Predicated region
        $region25: #{tpu_custom_call.1} parent=11 // pred_check
          %p332 = pneg %p135
        $region26: #{tpu_custom_call.1} parent=11 // pred_check_branch
          %334 = sbr.rel (%p332) target = $region28
        $region27: #{tpu_custom_call.1} parent=11 // pred_region
          _
        $region28: #{tpu_custom_call.1} parent=11 // pred_fallthru
          _
        // Predicated region
        $region29: #{tpu_custom_call.1} parent=11 // pred_check
          %p335 = pneg %p156
        $region30: #{tpu_custom_call.1} parent=11 // pred_check_branch
          %337 = sbr.rel (%p335) target = $region32
        $region31: #{tpu_custom_call.1} parent=11 // pred_region
          _
        $region32: #{tpu_custom_call.1} parent=11 // pred_fallthru
          _
        // Predicated region
        $region33: #{tpu_custom_call.1} parent=11 // pred_check
          %p338 = pneg %p177
        $region34: #{tpu_custom_call.1} parent=11 // pred_check_branch
          %340 = sbr.rel (%p338) target = $region36
        $region35: #{tpu_custom_call.1} parent=11 // pred_region
          _
        $region36: #{tpu_custom_call.1} parent=11 // pred_fallthru
          _
        // Predicated region
        $region37: #{tpu_custom_call.1} parent=11 // pred_check
          %p341 = pneg %p198
        $region38: #{tpu_custom_call.1} parent=11 // pred_check_branch
          %343 = sbr.rel (%p341) target = $region40
        $region39: #{tpu_custom_call.1} parent=11 // pred_region
          _
        $region40: #{tpu_custom_call.1} parent=11 // pred_fallthru
          _
        // Predicated region
        $region41: #{tpu_custom_call.1} parent=11 // pred_check
          %p344 = pneg %p219
        $region42: #{tpu_custom_call.1} parent=11 // pred_check_branch
          %346 = sbr.rel (%p344) target = $region44
        $region43: #{tpu_custom_call.1} parent=11 // pred_region
          _
        $region44: #{tpu_custom_call.1} parent=11 // pred_fallthru
          _
      $region12: #{tpu_custom_call.1} parent=5 // pred_fallthru
        _
      %p347 = scmp.lt.s32.totalorder %s25, 2
      // Predicated region
      $region45: #{tpu_custom_call.1} parent=5 // pred_check
        %p348 = pneg %p347
      $region46: #{tpu_custom_call.1} parent=5 // pred_check_branch
        %350 = sbr.rel (%p348) target = $region48
      $region47: #{tpu_custom_call.1} parent=5 // pred_region
        // Predicated region
        $region49: #{tpu_custom_call.1} parent=47 // pred_check
          %p351 = pneg %p45
        $region50: #{tpu_custom_call.1} parent=47 // pred_check_branch
          %353 = sbr.rel (%p351) target = $region52
        $region51: #{tpu_custom_call.1} parent=47 // pred_region
          %p354 = scmp.lt.s32.totalorder %s25, 1
          %s355 = scalar_select %p354, %s25, 1
          %s356 = smul.addr %s355, 2
          %s357 = smul.addr %s356, 8
          %s358 = scalar_lea.vmem %s0, %s357
        $region52: #{tpu_custom_call.1} parent=47 // pred_fallthru
          _
      $region48: #{tpu_custom_call.1} parent=5 // pred_fallthru
        _
      %p359 = scmp.le.s32.totalorder 1, %s25
      %p360 = scmp.lt.s32.totalorder %s25, 3
      %p361 = pnand %p359, %p360
      %p362 = pneg %p361
      // Predicated region
      $region53: #{tpu_custom_call.1} parent=5 // pred_check
        _
      $region54: #{tpu_custom_call.1} parent=5 // pred_check_branch
        %364 = sbr.rel (%p361) target = $region56
      $region55: #{tpu_custom_call.1} parent=5 // pred_region
        %s365 = ssub.s32 %s25, 1
        // Predicated region
        $region57: #{tpu_custom_call.1} parent=55 // pred_check
          %p366 = pneg %p72
        $region58: #{tpu_custom_call.1} parent=55 // pred_check_branch
          %368 = sbr.rel (%p366) target = $region60
        $region59: #{tpu_custom_call.1} parent=55 // pred_region
          %370 = dma.done [#allocation3], 384
        $region60: #{tpu_custom_call.1} parent=55 // pred_fallthru
          _
        %p371 = scmp.lt.s32.totalorder %s30, 1
        %s372 = scalar_select %p371, %s30, 1
        %s373 = smul.addr %s372, 2
        %s374 = smul.addr %s373, 8
        %s375 = scalar_lea.vmem %s0, %s374
        %p376 = pneg %p51
        %p377 = pneg %p48
        %p378 = pneg %p72
        %p379 = pneg %p69
        %p380 = pneg %p93
        %p381 = pneg %p90
        %p382 = pneg %p114
        %p383 = pneg %p111
        %p384 = pneg %p135
        %p385 = pneg %p132
        %p386 = pneg %p156
        %p387 = pneg %p153
        %p388 = pneg %p177
        %p389 = pneg %p174
        %p390 = pneg %p198
        %p391 = pneg %p195
        %p392 = pneg %p219
        %p393 = pneg %p216
        %p394 = pneg %p245
        %p395 = pneg %p242
        %s396 = sand.u32 %s232, 1
        %s397 = scalar_lea.sflag [#allocation4], %s396
        %s398 = sand.u32 %s232, 1
        %s399 = smul.addr %s398, 4
        %s400 = scalar_lea.vmem [#allocation5], %s399
        %p401 = pneg %p271
        %p402 = pneg %p268
        %s403 = sand.u32 %s258, 1
        %s404 = scalar_lea.sflag [#allocation7], %s403
        %s405 = sand.u32 %s258, 1
        %s406 = smul.addr %s405, 4
        %s407 = scalar_lea.vmem [#allocation6], %s406
        %p408 = pneg %p297
        %p409 = pneg %p294
        %p410 = scmp.lt.s32.totalorder %s30, 1
        %s411 = scalar_select %p410, %s30, 1
        %s412 = smul.addr %s411, 2
        %s413 = smul.addr %s412, 4
        %s414 = scalar_lea.vmem %s11, %s413
        %p415 = scmp.lt.s32.totalorder %s30, 1
        %s416 = scalar_select %p415, %s30, 1
        %s417 = smul.addr %s416, 2
        %s418 = smul.addr %s417, 8
        %s419 = scalar_lea.vmem %s0, %s418
        %p420 = scmp.lt.s32.totalorder %s30, 1
        %s421 = scalar_select %p420, %s30, 1
        %s422 = smul.addr %s421, 2
        %s423 = smul.addr %s422, 4
        %s424 = scalar_lea.vmem %s11, %s423
        %v425 = vlaneseq
        %v426 = vand.u32 %v425, 127
        %v427 = vadd.s32 %v426, 128
        %vm428 = vcmp.lt.s32.totalorder %v426, 0
        %v429 = vsub.s32 0, %v426
        %v430 = vsel %vm428, %v429, %v426
        %v431 = vshrl.u32 %v430, 4
        %v432 = vand.u32 %v430, 15
        %v433 = vsub.s32 0, %v432
        %v434 = vsel %vm428, %v433, %v432
        %vm435 = vcmp.lt.s32.totalorder %v427, 0
        %v436 = vsub.s32 0, %v427
        %v437 = vsel %vm435, %v436, %v427
        %v438 = vshrl.u32 %v437, 4
        %v439 = vand.u32 %v437, 15
        %v440 = vsub.s32 0, %v439
        %v441 = vsel %vm435, %v440, %v439
        %vm442 = vcmp.ne.s32.totalorder %v434, 0
        %vm443 = vcmp.ne.s32.totalorder %v441, 0
        %vm444 = vcmp.lt.s32.totalorder %v434, 0
        %vm445 = vcmp.lt.s32.totalorder %v441, 0
        %vm446 = vmand %vm444, %vm442
        %vm447 = vmand %vm445, %vm443
        %v448 = vadd.s32 %v434, 16
        %v449 = vadd.s32 %v441, 16
        %v450 = vsel %vm446, %v448, %v434
        %v451 = vsel %vm447, %v449, %v441
        %vm452 = vcmp.lt.s32.totalorder %v450, 15
        %vm453 = vcmp.lt.s32.totalorder %v451, 15
        %vm454 = vcmp.gt.s32.totalorder %v450, 0
        %vm455 = vcmp.gt.s32.totalorder %v451, 0
        %v456 = vld [vmem:[%s419] sm:$0xff]
        %v457 = vld [vmem:[%s419 + $0x8] sm:$0xff]
        %460 = vrot.lane.b32.xlu0 %v456, 17
        %v461 = vpop.permute.xlu0 %460
        %462 = vrot.lane.b32.xlu0 %v457, 17
        %v463 = vpop.permute.xlu0 %462
        %vm464 = vcmask 138240
        %v465 = vsel %vm464, %v461, %v463
        %v468 = vsel %vm464, 0.0, %v461
        %v469 = vsel %vm454, 1, 0
        %v470 = vsel %vm455, 1, 0
        %vm471 = vcmp.eq.s32.totalorder %v469, 1
        %vm472 = vcmp.eq.s32.totalorder %v470, 1
        %v473 = vsel %vm471, %v468, 0.0
        %v474 = vsel %vm472, %v465, 0.0
        %475 = vrot.lane.b32.xlu0 %v456, 16
        %v476 = vpop.permute.xlu0 %475
        %477 = vrot.lane.b32.xlu0 %v457, 16
        %v478 = vpop.permute.xlu0 %477
        %vm479 = vcmask 130048
        %v480 = vsel %vm479, %v476, %v478
        %v483 = vsel %vm479, 0.0, %v476
        %484 = vrot.lane.b32.xlu0 %v456, 15
        %v485 = vpop.permute.xlu0 %484
        %486 = vrot.lane.b32.xlu0 %v457, 15
        %v487 = vpop.permute.xlu0 %486
        %vm488 = vcmask 121856
        %v489 = vsel %vm488, %v485, %v487
        %v492 = vsel %vm488, 0.0, %v485
        %v493 = vsel %vm452, 1, 0
        %v494 = vsel %vm453, 1, 0
        %vm495 = vcmp.eq.s32.totalorder %v493, 1
        %vm496 = vcmp.eq.s32.totalorder %v494, 1
        %v497 = vsel %vm495, %v492, 0.0
        %v498 = vsel %vm496, %v489, 0.0
        %499 = vrot.lane.b32.xlu0 %v456, 1
        %v500 = vpop.permute.xlu0 %499
        %501 = vrot.lane.b32.xlu0 %v457, 1
        %v502 = vpop.permute.xlu0 %501
        %vm503 = vcmask 7168
        %v504 = vsel %vm503, %v500, %v502
        %v507 = vsel %vm503, 0.0, %v500
        %v508 = vsel %vm471, %v507, 0.0
        %v509 = vsel %vm472, %v504, 0.0
        %510 = vrot.lane.b32.xlu0 %v456, 127
        %v511 = vpop.permute.xlu0 %510
        %512 = vrot.lane.b32.xlu0 %v457, 127
        %v513 = vpop.permute.xlu0 %512
        %vm514 = vcmask 1039360
        %v515 = vsel %vm514, %v511, %v513
        %v518 = vsel %vm514, %v513, 0.0
        %v519 = vsel %vm495, %v515, 0.0
        %v520 = vsel %vm496, %v518, 0.0
        %521 = vrot.lane.b32.xlu0 %v456, 113
        %v522 = vpop.permute.xlu0 %521
        %523 = vrot.lane.b32.xlu0 %v457, 113
        %v524 = vpop.permute.xlu0 %523
        %vm525 = vcmask 924672
        %v526 = vsel %vm525, %v522, %v524
        %v529 = vsel %vm525, %v524, 0.0
        %v530 = vsel %vm471, %v526, 0.0
        %v531 = vsel %vm472, %v529, 0.0
        %532 = vrot.lane.b32.xlu0 %v456, 112
        %v533 = vpop.permute.xlu0 %532
        %534 = vrot.lane.b32.xlu0 %v457, 112
        %v535 = vpop.permute.xlu0 %534
        %vm536 = vcmask 916480
        %v537 = vsel %vm536, %v533, %v535
        %v540 = vsel %vm536, %v535, 0.0
        %541 = vrot.lane.b32.xlu0 %v456, 111
        %v542 = vpop.permute.xlu0 %541
        %543 = vrot.lane.b32.xlu0 %v457, 111
        %v544 = vpop.permute.xlu0 %543
        %vm545 = vcmask 908288
        %v546 = vsel %vm545, %v542, %v544
        %v549 = vsel %vm545, %v544, 0.0
        %v550 = vsel %vm495, %v546, 0.0
        %v551 = vsel %vm496, %v549, 0.0
        %v552 = vld [vmem:[#allocation2] sm:$0xff]
        %v553 = vld [vmem:[#allocation2 + $0x8] sm:$0xff]
        %v554 = vld [vmem:[#allocation2 + $0x10] sm:$0xff]
        %v555 = vld [vmem:[%s2] sm:$0xff]
        %v556 = vld [vmem:[%s2 + $0x8] sm:$0xff]
        %v557 = vld [vmem:[%s2 + $0x10] sm:$0xff]
        %559 = vset.pattern.permute.xlu0 0
        %560 = vperm.xlu0 %559, %v555
        %v561 = vpop.permute.xlu0 %560
        %564 = vset.pattern.permute.xlu0 0
        %565 = vperm.xlu0 %564, %v556
        %v566 = vpop.permute.xlu0 %565
        %569 = vset.pattern.permute.xlu0 0
        %570 = vperm.xlu0 %569, %v557
        %v571 = vpop.permute.xlu0 %570
        %vm573 = vcmask 588800
        %v575 = vsel %vm573, %v552, 0
        %v578 = vsel %vm573, %v553, 0
        %v581 = vsel %vm573, %v554, 0
        %583 = vmatpush.msra.mxu0 0.0
        %584 = vmatpush.msra.mxu0 0.0
        %585 = vmatpush.msra.mxu0 0.0
        %586 = vmatpush.msra.mxu0 0.0
        %587 = vmatpush.msra.mxu0 0.0
        %588 = vmatpush.msra.mxu0 0.0
        %589 = vmatpush.msra.mxu0 0.0
        %590 = vmatpush.msra.mxu0 %v550
        %591 = vmatpush.msra.mxu0 %v537
        %592 = vmatpush.msra.mxu0 %v530
        %593 = vmatpush.msra.mxu0 %v519
        %594 = vmatpush.msra.mxu0 %v456
        %595 = vmatpush.msra.mxu0 %v508
        %596 = vmatpush.msra.mxu0 %v497
        %597 = vmatpush.msra.mxu0 %v483
        %598 = vmatpush.msra.mxu0 %v473
        %599 = vmatmul.f32.gmra.mxu0 %v575
        %v600 = vpop.f32.mrf.mxu0
        %v601 = vadd.f32 %v561, %v600
        %602 = vmatmul.f32.gmra.mxu0 %v578
        %v603 = vpop.f32.mrf.mxu0
        %v604 = vadd.f32 %v566, %v603
        %605 = vmatmul.f32.gmra.mxu0 %v581
        %v606 = vpop.f32.mrf.mxu0
        %v607 = vadd.f32 %v571, %v606
        %608 = vdwg.mxu0
        %609 = vmatpush.msra.mxu0 0.0
        %610 = vmatpush.msra.mxu0 0.0
        %611 = vmatpush.msra.mxu0 0.0
        %612 = vmatpush.msra.mxu0 0.0
        %613 = vmatpush.msra.mxu0 0.0
        %614 = vmatpush.msra.mxu0 0.0
        %615 = vmatpush.msra.mxu0 0.0
        %616 = vmatpush.msra.mxu0 %v551
        %617 = vmatpush.msra.mxu0 %v540
        %618 = vmatpush.msra.mxu0 %v531
        %619 = vmatpush.msra.mxu0 %v520
        %620 = vmatpush.msra.mxu0 %v457
        %621 = vmatpush.msra.mxu0 %v509
        %622 = vmatpush.msra.mxu0 %v498
        %623 = vmatpush.msra.mxu0 %v480
        %624 = vmatpush.msra.mxu0 %v474
        %625 = vmatmul.f32.gmra.mxu0 %v575
        %v626 = vpop.f32.mrf.mxu0
        %v627 = vadd.f32 %v561, %v626
        %628 = vmatmul.f32.gmra.mxu0 %v578
        %v629 = vpop.f32.mrf.mxu0
        %v630 = vadd.f32 %v566, %v629
        %631 = vmatmul.f32.gmra.mxu0 %v581
        %v632 = vpop.f32.mrf.mxu0
        %v633 = vadd.f32 %v571, %v632
        %634 = vdwg.mxu0
        %v635 = vmax.f32 %v601, 0.0
        %v636 = vmax.f32 %v627, 0.0
        %v637 = vmax.f32 %v604, 0.0
        %v638 = vmax.f32 %v630, 0.0
        %v639 = vmax.f32 %v607, 0.0
        %v640 = vmax.f32 %v633, 0.0
        %643 = vrot.lane.b32.xlu0 %v635, 17
        %v644 = vpop.permute.xlu0 %643
        %645 = vrot.lane.b32.xlu0 %v636, 17
        %v646 = vpop.permute.xlu0 %645
        %v647 = vsel %vm464, %v644, %v646
        %v650 = vsel %vm464, 0.0, %v644
        %v651 = vsel %vm471, %v650, 0.0
        %v652 = vsel %vm472, %v647, 0.0
        %653 = vrot.lane.b32.xlu0 %v635, 16
        %v654 = vpop.permute.xlu0 %653
        %655 = vrot.lane.b32.xlu0 %v636, 16
        %v656 = vpop.permute.xlu0 %655
        %v657 = vsel %vm479, %v654, %v656
        %v660 = vsel %vm479, 0.0, %v654
        %661 = vrot.lane.b32.xlu0 %v635, 15
        %v662 = vpop.permute.xlu0 %661
        %663 = vrot.lane.b32.xlu0 %v636, 15
        %v664 = vpop.permute.xlu0 %663
        %v665 = vsel %vm488, %v662, %v664
        %v668 = vsel %vm488, 0.0, %v662
        %v669 = vsel %vm495, %v668, 0.0
        %v670 = vsel %vm496, %v665, 0.0
        %671 = vrot.lane.b32.xlu0 %v635, 1
        %v672 = vpop.permute.xlu0 %671
        %673 = vrot.lane.b32.xlu0 %v636, 1
        %v674 = vpop.permute.xlu0 %673
        %v675 = vsel %vm503, %v672, %v674
        %v678 = vsel %vm503, 0.0, %v672
        %v679 = vsel %vm471, %v678, 0.0
        %v680 = vsel %vm472, %v675, 0.0
        %681 = vrot.lane.b32.xlu0 %v635, 127
        %v682 = vpop.permute.xlu0 %681
        %683 = vrot.lane.b32.xlu0 %v636, 127
        %v684 = vpop.permute.xlu0 %683
        %v685 = vsel %vm514, %v682, %v684
        %v688 = vsel %vm514, %v684, 0.0
        %v689 = vsel %vm495, %v685, 0.0
        %v690 = vsel %vm496, %v688, 0.0
        %691 = vrot.lane.b32.xlu0 %v635, 113
        %v692 = vpop.permute.xlu0 %691
        %693 = vrot.lane.b32.xlu0 %v636, 113
        %v694 = vpop.permute.xlu0 %693
        %v695 = vsel %vm525, %v692, %v694
        %v698 = vsel %vm525, %v694, 0.0
        %v699 = vsel %vm471, %v695, 0.0
        %v700 = vsel %vm472, %v698, 0.0
        %701 = vrot.lane.b32.xlu0 %v635, 112
        %v702 = vpop.permute.xlu0 %701
        %703 = vrot.lane.b32.xlu0 %v636, 112
        %v704 = vpop.permute.xlu0 %703
        %v705 = vsel %vm536, %v702, %v704
        %v708 = vsel %vm536, %v704, 0.0
        %709 = vrot.lane.b32.xlu0 %v635, 111
        %v710 = vpop.permute.xlu0 %709
        %711 = vrot.lane.b32.xlu0 %v636, 111
        %v712 = vpop.permute.xlu0 %711
        %v713 = vsel %vm545, %v710, %v712
        %v716 = vsel %vm545, %v712, 0.0
        %v717 = vsel %vm495, %v713, 0.0
        %v718 = vsel %vm496, %v716, 0.0
        %v719 = vld [vmem:[%s3] sm:$0x3]
        %v720 = vld [vmem:[%s4] sm:$0x3]
        %722 = vset.pattern.permute.xlu0 0
        %723 = vperm.xlu0 %722, %v720
        %v724 = vpop.permute.xlu0 %723
        %v727 = vsel %vm573, %v719, 0
        %729 = vmatpush.msra.mxu0 0.0
        %730 = vmatpush.msra.mxu0 0.0
        %731 = vmatpush.msra.mxu0 0.0
        %732 = vmatpush.msra.mxu0 0.0
        %733 = vmatpush.msra.mxu0 0.0
        %734 = vmatpush.msra.mxu0 0.0
        %735 = vmatpush.msra.mxu0 0.0
        %736 = vmatpush.msra.mxu0 %v717
        %737 = vmatpush.msra.mxu0 %v705
        %738 = vmatpush.msra.mxu0 %v699
        %739 = vmatpush.msra.mxu0 %v689
        %740 = vmatpush.msra.mxu0 %v635
        %741 = vmatpush.msra.mxu0 %v679
        %742 = vmatpush.msra.mxu0 %v669
        %743 = vmatpush.msra.mxu0 %v660
        %744 = vmatpush.msra.mxu0 %v651
        %745 = vmatmul.f32.gmra.mxu0 %v727
        %v746 = vpop.f32.mrf.mxu0
        %v747 = vadd.f32 %v724, %v746
        %748 = vdwg.mxu0
        %749 = vmatpush.msra.mxu0 0.0
        %750 = vmatpush.msra.mxu0 0.0
        %751 = vmatpush.msra.mxu0 0.0
        %752 = vmatpush.msra.mxu0 0.0
        %753 = vmatpush.msra.mxu0 0.0
        %754 = vmatpush.msra.mxu0 0.0
        %755 = vmatpush.msra.mxu0 0.0
        %756 = vmatpush.msra.mxu0 %v718
        %757 = vmatpush.msra.mxu0 %v708
        %758 = vmatpush.msra.mxu0 %v700
        %759 = vmatpush.msra.mxu0 %v690
        %760 = vmatpush.msra.mxu0 %v636
        %761 = vmatpush.msra.mxu0 %v680
        %762 = vmatpush.msra.mxu0 %v670
        %763 = vmatpush.msra.mxu0 %v657
        %764 = vmatpush.msra.mxu0 %v652
        %765 = vmatmul.f32.gmra.mxu0 %v727
        %v766 = vpop.f32.mrf.mxu0
        %v767 = vadd.f32 %v724, %v766
        %768 = vdwg.mxu0
        %v771 = vrot.slane %v767, 6
        %vm772 = vcmask 1041408
        %v773 = vsel %vm772, %v747, %v771
        %775 = vst [vmem:[%s400] sm:$0xf] %v773
        %778 = vrot.lane.b32.xlu0 %v637, 17
        %v779 = vpop.permute.xlu0 %778
        %780 = vrot.lane.b32.xlu0 %v638, 17
        %v781 = vpop.permute.xlu0 %780
        %v782 = vsel %vm464, %v779, %v781
        %v785 = vsel %vm464, 0.0, %v779
        %v786 = vsel %vm471, %v785, 0.0
        %v787 = vsel %vm472, %v782, 0.0
        %788 = vrot.lane.b32.xlu0 %v637, 16
        %v789 = vpop.permute.xlu0 %788
        %790 = vrot.lane.b32.xlu0 %v638, 16
        %v791 = vpop.permute.xlu0 %790
        %v792 = vsel %vm479, %v789, %v791
        %v795 = vsel %vm479, 0.0, %v789
        %796 = vrot.lane.b32.xlu0 %v637, 15
        %v797 = vpop.permute.xlu0 %796
        %798 = vrot.lane.b32.xlu0 %v638, 15
        %v799 = vpop.permute.xlu0 %798
        %v800 = vsel %vm488, %v797, %v799
        %v803 = vsel %vm488, 0.0, %v797
        %v804 = vsel %vm495, %v803, 0.0
        %v805 = vsel %vm496, %v800, 0.0
        %806 = vrot.lane.b32.xlu0 %v637, 1
        %v807 = vpop.permute.xlu0 %806
        %808 = vrot.lane.b32.xlu0 %v638, 1
        %v809 = vpop.permute.xlu0 %808
        %v810 = vsel %vm503, %v807, %v809
        %v813 = vsel %vm503, 0.0, %v807
        %v814 = vsel %vm471, %v813, 0.0
        %v815 = vsel %vm472, %v810, 0.0
        %816 = vrot.lane.b32.xlu0 %v637, 127
        %v817 = vpop.permute.xlu0 %816
        %818 = vrot.lane.b32.xlu0 %v638, 127
        %v819 = vpop.permute.xlu0 %818
        %v820 = vsel %vm514, %v817, %v819
        %v823 = vsel %vm514, %v819, 0.0
        %v824 = vsel %vm495, %v820, 0.0
        %v825 = vsel %vm496, %v823, 0.0
        %826 = vrot.lane.b32.xlu0 %v637, 113
        %v827 = vpop.permute.xlu0 %826
        %828 = vrot.lane.b32.xlu0 %v638, 113
        %v829 = vpop.permute.xlu0 %828
        %v830 = vsel %vm525, %v827, %v829
        %v833 = vsel %vm525, %v829, 0.0
        %v834 = vsel %vm471, %v830, 0.0
        %v835 = vsel %vm472, %v833, 0.0
        %836 = vrot.lane.b32.xlu0 %v637, 112
        %v837 = vpop.permute.xlu0 %836
        %838 = vrot.lane.b32.xlu0 %v638, 112
        %v839 = vpop.permute.xlu0 %838
        %v840 = vsel %vm536, %v837, %v839
        %v843 = vsel %vm536, %v839, 0.0
        %844 = vrot.lane.b32.xlu0 %v637, 111
        %v845 = vpop.permute.xlu0 %844
        %846 = vrot.lane.b32.xlu0 %v638, 111
        %v847 = vpop.permute.xlu0 %846
        %v848 = vsel %vm545, %v845, %v847
        %v851 = vsel %vm545, %v847, 0.0
        %v852 = vsel %vm495, %v848, 0.0
        %v853 = vsel %vm496, %v851, 0.0
        %v854 = vld [vmem:[%s5] sm:$0x3]
        %v855 = vld [vmem:[%s6] sm:$0x3]
        %857 = vset.pattern.permute.xlu0 0
        %858 = vperm.xlu0 %857, %v855
        %v859 = vpop.permute.xlu0 %858
        %v862 = vsel %vm573, %v854, 0
        %864 = vmatpush.msra.mxu0 0.0
        %865 = vmatpush.msra.mxu0 0.0
        %866 = vmatpush.msra.mxu0 0.0
        %867 = vmatpush.msra.mxu0 0.0
        %868 = vmatpush.msra.mxu0 0.0
        %869 = vmatpush.msra.mxu0 0.0
        %870 = vmatpush.msra.mxu0 0.0
        %871 = vmatpush.msra.mxu0 %v852
        %872 = vmatpush.msra.mxu0 %v840
        %873 = vmatpush.msra.mxu0 %v834
        %874 = vmatpush.msra.mxu0 %v824
        %875 = vmatpush.msra.mxu0 %v637
        %876 = vmatpush.msra.mxu0 %v814
        %877 = vmatpush.msra.mxu0 %v804
        %878 = vmatpush.msra.mxu0 %v795
        %879 = vmatpush.msra.mxu0 %v786
        %880 = vmatmul.f32.gmra.mxu0 %v862
        %v881 = vpop.f32.mrf.mxu0
        %v882 = vadd.f32 %v859, %v881
        %883 = vdwg.mxu0
        %884 = vmatpush.msra.mxu0 0.0
        %885 = vmatpush.msra.mxu0 0.0
        %886 = vmatpush.msra.mxu0 0.0
        %887 = vmatpush.msra.mxu0 0.0
        %888 = vmatpush.msra.mxu0 0.0
        %889 = vmatpush.msra.mxu0 0.0
        %890 = vmatpush.msra.mxu0 0.0
        %891 = vmatpush.msra.mxu0 %v853
        %892 = vmatpush.msra.mxu0 %v843
        %893 = vmatpush.msra.mxu0 %v835
        %894 = vmatpush.msra.mxu0 %v825
        %895 = vmatpush.msra.mxu0 %v638
        %896 = vmatpush.msra.mxu0 %v815
        %897 = vmatpush.msra.mxu0 %v805
        %898 = vmatpush.msra.mxu0 %v792
        %899 = vmatpush.msra.mxu0 %v787
        %900 = vmatmul.f32.gmra.mxu0 %v862
        %v901 = vpop.f32.mrf.mxu0
        %v902 = vadd.f32 %v859, %v901
        %903 = vdwg.mxu0
        %v906 = vrot.slane %v902, 6
        %v907 = vsel %vm772, %v882, %v906
        %909 = vst [vmem:[%s407] sm:$0xf] %v907
        %912 = vrot.lane.b32.xlu0 %v639, 17
        %v913 = vpop.permute.xlu0 %912
        %914 = vrot.lane.b32.xlu0 %v640, 17
        %v915 = vpop.permute.xlu0 %914
        %v916 = vsel %vm464, %v913, %v915
        %v919 = vsel %vm464, 0.0, %v913
        %v920 = vsel %vm471, %v919, 0.0
        %v921 = vsel %vm472, %v916, 0.0
        %922 = vrot.lane.b32.xlu0 %v639, 16
        %v923 = vpop.permute.xlu0 %922
        %924 = vrot.lane.b32.xlu0 %v640, 16
        %v925 = vpop.permute.xlu0 %924
        %v926 = vsel %vm479, %v923, %v925
        %v929 = vsel %vm479, 0.0, %v923
        %930 = vrot.lane.b32.xlu0 %v639, 15
        %v931 = vpop.permute.xlu0 %930
        %932 = vrot.lane.b32.xlu0 %v640, 15
        %v933 = vpop.permute.xlu0 %932
        %v934 = vsel %vm488, %v931, %v933
        %v937 = vsel %vm488, 0.0, %v931
        %v938 = vsel %vm495, %v937, 0.0
        %v939 = vsel %vm496, %v934, 0.0
        %940 = vrot.lane.b32.xlu0 %v639, 1
        %v941 = vpop.permute.xlu0 %940
        %942 = vrot.lane.b32.xlu0 %v640, 1
        %v943 = vpop.permute.xlu0 %942
        %v944 = vsel %vm503, %v941, %v943
        %v947 = vsel %vm503, 0.0, %v941
        %v948 = vsel %vm471, %v947, 0.0
        %v949 = vsel %vm472, %v944, 0.0
        %950 = vrot.lane.b32.xlu0 %v639, 127
        %v951 = vpop.permute.xlu0 %950
        %952 = vrot.lane.b32.xlu0 %v640, 127
        %v953 = vpop.permute.xlu0 %952
        %v954 = vsel %vm514, %v951, %v953
        %v957 = vsel %vm514, %v953, 0.0
        %v958 = vsel %vm495, %v954, 0.0
        %v959 = vsel %vm496, %v957, 0.0
        %960 = vrot.lane.b32.xlu0 %v639, 113
        %v961 = vpop.permute.xlu0 %960
        %962 = vrot.lane.b32.xlu0 %v640, 113
        %v963 = vpop.permute.xlu0 %962
        %v964 = vsel %vm525, %v961, %v963
        %v967 = vsel %vm525, %v963, 0.0
        %v968 = vsel %vm471, %v964, 0.0
        %v969 = vsel %vm472, %v967, 0.0
        %970 = vrot.lane.b32.xlu0 %v639, 112
        %v971 = vpop.permute.xlu0 %970
        %972 = vrot.lane.b32.xlu0 %v640, 112
        %v973 = vpop.permute.xlu0 %972
        %v974 = vsel %vm536, %v971, %v973
        %v977 = vsel %vm536, %v973, 0.0
        %978 = vrot.lane.b32.xlu0 %v639, 111
        %v979 = vpop.permute.xlu0 %978
        %980 = vrot.lane.b32.xlu0 %v640, 111
        %v981 = vpop.permute.xlu0 %980
        %v982 = vsel %vm545, %v979, %v981
        %v985 = vsel %vm545, %v981, 0.0
        %v986 = vsel %vm495, %v982, 0.0
        %v987 = vsel %vm496, %v985, 0.0
        %v988 = vld [vmem:[%s7] sm:$0x7]
        %v989 = vld [vmem:[%s8] sm:$0x7]
        %991 = vset.pattern.permute.xlu0 0
        %992 = vperm.xlu0 %991, %v989
        %v993 = vpop.permute.xlu0 %992
        %v996 = vsel %vm573, %v988, 0
        %998 = vmatpush.msra.mxu0 0.0
        %999 = vmatpush.msra.mxu0 0.0
        %1000 = vmatpush.msra.mxu0 0.0
        %1001 = vmatpush.msra.mxu0 0.0
        %1002 = vmatpush.msra.mxu0 0.0
        %1003 = vmatpush.msra.mxu0 0.0
        %1004 = vmatpush.msra.mxu0 0.0
        %1005 = vmatpush.msra.mxu0 %v986
        %1006 = vmatpush.msra.mxu0 %v974
        %1007 = vmatpush.msra.mxu0 %v968
        %1008 = vmatpush.msra.mxu0 %v958
        %1009 = vmatpush.msra.mxu0 %v639
        %1010 = vmatpush.msra.mxu0 %v948
        %1011 = vmatpush.msra.mxu0 %v938
        %1012 = vmatpush.msra.mxu0 %v929
        %1013 = vmatpush.msra.mxu0 %v920
        %1014 = vmatmul.f32.gmra.mxu0 %v996
        %v1015 = vpop.f32.mrf.mxu0
        %v1016 = vadd.f32 %v993, %v1015
        %1017 = vdwg.mxu0
        %1018 = vmatpush.msra.mxu0 0.0
        %1019 = vmatpush.msra.mxu0 0.0
        %1020 = vmatpush.msra.mxu0 0.0
        %1021 = vmatpush.msra.mxu0 0.0
        %1022 = vmatpush.msra.mxu0 0.0
        %1023 = vmatpush.msra.mxu0 0.0
        %1024 = vmatpush.msra.mxu0 0.0
        %1025 = vmatpush.msra.mxu0 %v987
        %1026 = vmatpush.msra.mxu0 %v977
        %1027 = vmatpush.msra.mxu0 %v969
        %1028 = vmatpush.msra.mxu0 %v959
        %1029 = vmatpush.msra.mxu0 %v640
        %1030 = vmatpush.msra.mxu0 %v949
        %1031 = vmatpush.msra.mxu0 %v939
        %1032 = vmatpush.msra.mxu0 %v926
        %1033 = vmatpush.msra.mxu0 %v921
        %1034 = vmatmul.f32.gmra.mxu0 %v996
        %v1035 = vpop.f32.mrf.mxu0
        %v1036 = vadd.f32 %v993, %v1035
        %1037 = vdwg.mxu0
        %v1040 = vrot.slane %v1036, 4
        %vm1041 = vcmask 1043456
        %v1042 = vsel %vm1041, %v1016, %v1040
        %1044 = vst [vmem:[%s424] sm:$0x77] %v1042
        %s1045 = sand.u32 %s232, 1
        %s1046 = scalar_lea.sflag [#allocation4], %s1045
        %s1047 = sand.u32 %s232, 1
        %s1048 = smul.addr %s1047, 4
        %s1049 = scalar_lea.vmem [#allocation5], %s1048
        %s1050 = sand.u32 %s258, 1
        %s1051 = scalar_lea.sflag [#allocation7], %s1050
        %s1052 = sand.u32 %s258, 1
        %s1053 = smul.addr %s1052, 4
        %s1054 = scalar_lea.vmem [#allocation6], %s1053
        %p1055 = scmp.lt.s32.totalorder %s30, 1
        %s1056 = scalar_select %p1055, %s30, 1
        %s1057 = smul.addr %s1056, 2
        %s1058 = smul.addr %s1057, 4
        %s1059 = scalar_lea.vmem %s11, %s1058
        // Predicated region
        $region61: #{tpu_custom_call.1} parent=55 // pred_check
          %p1060 = pneg %p242
        $region62: #{tpu_custom_call.1} parent=55 // pred_check_branch
          %1062 = sbr.rel (%p1060) target = $region64
        $region63: #{tpu_custom_call.1} parent=55 // pred_region
          %1064 = vsyncadd %s1046, 0
          %s1065 = smul.addr %s30, 2
          %s1066 = smul.addr %s1065, 2
          %s1067 = scalar_lea.hbm %s9, %s1066
          %s1069 = sshll.u32 %s1049, 4
          %s1070 = int_to_ptr.vmem [resolvable:$true] %s1069
          %s1071 = sshll.u32 %s1067, 4
          %s1072 = int_to_ptr.hbm [resolvable:$true] %s1071
          %1074 = dma.vmem_to_hbm [thread:$0]  %s1070, 64, %s1072, %s1046
        $region64: #{tpu_custom_call.1} parent=55 // pred_fallthru
          _
        // Predicated region
        $region65: #{tpu_custom_call.1} parent=55 // pred_check
          %p1075 = pneg %p268
        $region66: #{tpu_custom_call.1} parent=55 // pred_check_branch
          %1077 = sbr.rel (%p1075) target = $region68
        $region67: #{tpu_custom_call.1} parent=55 // pred_region
          %1079 = vsyncadd %s1051, 0
          %s1080 = smul.addr %s30, 2
          %s1081 = smul.addr %s1080, 2
          %s1082 = scalar_lea.hbm %s10, %s1081
          %s1084 = sshll.u32 %s1054, 4
          %s1085 = int_to_ptr.vmem [resolvable:$true] %s1084
          %s1086 = sshll.u32 %s1082, 4
          %s1087 = int_to_ptr.hbm [resolvable:$true] %s1086
          %1089 = dma.vmem_to_hbm [thread:$0]  %s1085, 64, %s1087, %s1051
        $region68: #{tpu_custom_call.1} parent=55 // pred_fallthru
          _
        // Predicated region
        $region69: #{tpu_custom_call.1} parent=55 // pred_check
          %p1090 = pneg %p294
        $region70: #{tpu_custom_call.1} parent=55 // pred_check_branch
          %1092 = sbr.rel (%p1090) target = $region72
        $region71: #{tpu_custom_call.1} parent=55 // pred_region
          _
        $region72: #{tpu_custom_call.1} parent=55 // pred_fallthru
          _
      $region56: #{tpu_custom_call.1} parent=5 // pred_fallthru
        _
      %p1093 = scmp.le.s32.totalorder 2, %s25
      // Predicated region
      $region73: #{tpu_custom_call.1} parent=5 // pred_check
        %p1094 = pneg %p1093
      $region74: #{tpu_custom_call.1} parent=5 // pred_check_branch
        %1096 = sbr.rel (%p1094) target = $region76
      $region75: #{tpu_custom_call.1} parent=5 // pred_region
        %s1097 = ssub.s32 %s25, 2
        // Predicated region
        $region77: #{tpu_custom_call.1} parent=75 // pred_check
          %p1098 = pneg %p248
        $region78: #{tpu_custom_call.1} parent=75 // pred_check_branch
          %1100 = sbr.rel (%p1098) target = $region80
        $region79: #{tpu_custom_call.1} parent=75 // pred_region
          %s1101 = sand.u32 %s233, 1
          %s1102 = scalar_lea.sflag [#allocation4], %s1101
          %s1103 = sand.u32 %s233, 1
          %s1104 = smul.addr %s1103, 4
          %s1105 = scalar_lea.vmem [#allocation5], %s1104
          %1107 = dma.done %s1102, 64
        $region80: #{tpu_custom_call.1} parent=75 // pred_fallthru
          _
        // Predicated region
        $region81: #{tpu_custom_call.1} parent=75 // pred_check
          %p1108 = pneg %p274
        $region82: #{tpu_custom_call.1} parent=75 // pred_check_branch
          %1110 = sbr.rel (%p1108) target = $region84
        $region83: #{tpu_custom_call.1} parent=75 // pred_region
          %s1111 = sand.u32 %s259, 1
          %s1112 = scalar_lea.sflag [#allocation7], %s1111
          %s1113 = sand.u32 %s259, 1
          %s1114 = smul.addr %s1113, 4
          %s1115 = scalar_lea.vmem [#allocation6], %s1114
          %1117 = dma.done %s1112, 64
        $region84: #{tpu_custom_call.1} parent=75 // pred_fallthru
          _
        // Predicated region
        $region85: #{tpu_custom_call.1} parent=75 // pred_check
          %p1118 = pneg %p300
        $region86: #{tpu_custom_call.1} parent=75 // pred_check_branch
          %1120 = sbr.rel (%p1118) target = $region88
        $region87: #{tpu_custom_call.1} parent=75 // pred_region
          %p1121 = scmp.lt.s32.totalorder %s31, 1
          %s1122 = scalar_select %p1121, %s31, 1
          %s1123 = smul.addr %s1122, 2
          %s1124 = smul.addr %s1123, 4
          %s1125 = scalar_lea.vmem %s11, %s1124
        $region88: #{tpu_custom_call.1} parent=75 // pred_fallthru
          _
      $region76: #{tpu_custom_call.1} parent=5 // pred_fallthru
        _
    $region6: #{tpu_custom_call.1} parent=1 // loop_footer
      %s29 = sadd.s32 1, %s25
    $region7: #{tpu_custom_call.1} parent=1 // loop_footer_branch
      %24 = sbr.rel target = $region3
    $region8: #{tpu_custom_call.1} parent=1 // loop_exit
      _
    %1126 = vsyncpa [#allocation3], 1
    %s1127 = scalar_lea.sflag [#allocation3], 1
    %1128 = vsyncpa %s1127, 1
    %1129 = vsyncpa [#allocation4], 1
    %s1130 = scalar_lea.sflag [#allocation4], 1
    %1131 = vsyncpa %s1130, 1
    %1132 = vsyncpa [#allocation7], 1
    %s1133 = scalar_lea.sflag [#allocation7], 1
    %1134 = vsyncpa %s1133, 1

</llo_original>
